<compile_context>
chip_gen: v6e
topology: v6e:2x2x1
jax: 0.10.0
libtpu: 0.0.40
codegen_flags: <defaults>
</compile_context>

<pallas_src>
import functools

import jax
import jax.numpy as jnp
from jax.experimental import pallas as pl
from jax.experimental.pallas import tpu as pltpu

LEAKY_SLOPE = 0.01  # torch.nn.LeakyReLU default negative_slope


def _leaky(x):
    return jnp.where(x > 0, x, LEAKY_SLOPE * x)


# ---------------------------------------------------------------------------
# Fused kernel: every CausalConvolutionBlock for a tile of TB batch elements.
# ---------------------------------------------------------------------------
def _fused_causal_cnn_kernel(*refs, layer_cfgs, L, tb):
    """refs = (x_ref, *param_refs, out_ref).

    x_ref:   (tb, c0, L)      channels-first, as the torch module hands it over
    out_ref: (tb, c_last, L)  channels-first, lane-dense along L
    Per block, param_refs holds:
      w1 (k, c_in, c_out) bf16, b1 (1, c_out) f32,
      w2 (k, c_out, c_out) bf16, b2 (1, c_out) f32,
      [wres (c_in, c_out) bf16, bres (1, c_out) f32]   # only if c_in != c_out
    """
    x_ref = refs[0]
    out_ref = refs[-1]
    params = refs[1:-1]
    M = tb * L

    # (tb, c0, L) -> (tb, L, c0) -> (M, c0): channels-last, batch-flattened
    # working layout (time -> sublanes, channels -> lanes).  The minor-dim
    # transpose rides the otherwise idle XLU slot.
    x3 = jnp.transpose(x_ref[...].astype(jnp.float32), (0, 2, 1))
    x = x3.reshape(M, x3.shape[-1])

    # Within-batch time index (computed once); used by every causal tap mask so
    # the roll over the flattened batch rows never leaks across batch elements.
    row = jax.lax.broadcasted_iota(jnp.int32, (M, 1), 0)
    t_idx = row % L

    def dilated_causal_conv(inp, w_ref, b_ref, k, dil):
        # Tap j needs inp delayed by s = (k-1-j)*dil with zeros for t < s.
        # Build it with pltpu.roll (XLU) + causal mask -- no padded temp, no
        # slice/concat relayouts -- and accumulate k small MXU dots in f32.
        w = w_ref[...]                                      # (k, c_in, c_out) bf16
        acc = jnp.dot(inp.astype(jnp.bfloat16), w[k - 1],
                      preferred_element_type=jnp.float32)   # tap with s == 0
        for j in range(k - 1):
            s = (k - 1 - j) * dil
            if s >= L:
                continue  # this tap only ever sees the causal zero padding
            tap = jnp.where(t_idx >= s, pltpu.roll(inp, s, axis=0), 0.0)
            acc = acc + jnp.dot(tap.astype(jnp.bfloat16), w[j],
                                preferred_element_type=jnp.float32)
        return acc + b_ref[...]                             # bias add in f32

    p = 0
    for (k, dil, c_in, c_out, identity_res) in layer_cfgs:
        w1_ref, b1_ref, w2_ref, b2_ref = params[p:p + 4]
        p += 4
        if identity_res:
            wres_ref = bres_ref = None
        else:
            wres_ref, bres_ref = params[p:p + 2]
            p += 2

        # conv1 -> LeakyReLU -> conv2 -> LeakyReLU  (elementwise math in f32)
        h = _leaky(dilated_causal_conv(x, w1_ref, b1_ref, k, dil))
        h = _leaky(dilated_causal_conv(h, w2_ref, b2_ref, k, dil))

        # Residual: identity when c_in == c_out (no matmul), else 1x1 conv.
        if identity_res:
            res = x
        else:
            res = (jnp.dot(x.astype(jnp.bfloat16), wres_ref[...],
                           preferred_element_type=jnp.float32)
                   + bres_ref[...])
        x = h + res

    # Lane-dense store: (M, c_last) -> (tb, c_last, L) so the stored minor dim
    # is the time axis and the module-facing (B, C_out, L) layout needs no
    # wrapper-side transpose.
    y = jnp.transpose(x.reshape(tb, L, x.shape[-1]), (0, 2, 1))
    out_ref[...] = y.astype(out_ref.dtype)


# ---------------------------------------------------------------------------
# Wrapper: (B, C_in, L) -> (B, C_out, L), exactly like the torch module.
# ---------------------------------------------------------------------------
def causal_cnn_forward(x_bcl, blocks):
    B, c0, L = x_bcl.shape
    c_last = blocks[-1]["c_out"]

    # Fold tb batch elements into each grid step (largest divisor of B up to 8)
    # so per-step overhead is amortized while large B still gives multiple
    # pipelined grid steps.
    tb = max(d for d in range(1, min(B, 8) + 1) if B % d == 0)

    def const_spec(shape):
        return pl.BlockSpec(shape, lambda b, n=len(shape): (0,) * n)

    inputs = [x_bcl]
    in_specs = [pl.BlockSpec((tb, c0, L), lambda b: (b, 0, 0))]
    layer_cfgs = []

    for blk in blocks:
        k, dil = blk["k"], blk["dilation"]
        c_in, c_out = blk["c_in"], blk["c_out"]
        identity_res = blk["wres"] is None
        layer_cfgs.append((k, dil, c_in, c_out, identity_res))

        # bf16 MXU operands (full rate on v6e/v7x, fine on v5e); biases stay f32.
        inputs += [blk["w1"].astype(jnp.bfloat16), blk["b1"],
                   blk["w2"].astype(jnp.bfloat16), blk["b2"]]
        in_specs += [const_spec((k, c_in, c_out)), const_spec((1, c_out)),
                     const_spec((k, c_out, c_out)), const_spec((1, c_out))]
        if not identity_res:
            inputs += [blk["wres"].astype(jnp.bfloat16), blk["bres"]]
            in_specs += [const_spec((c_in, c_out)), const_spec((1, c_out))]

    kernel = functools.partial(_fused_causal_cnn_kernel,
                               layer_cfgs=tuple(layer_cfgs), L=L, tb=tb)

    return pl.pallas_call(
        kernel,
        out_shape=jax.ShapeDtypeStruct((B, c_last, L), jnp.float32),
        grid=(B // tb,),
        in_specs=in_specs,
        out_specs=pl.BlockSpec((tb, c_last, L), lambda b: (b, 0, 0)),
        compiler_params=pltpu.CompilerParams(
            dimension_semantics=("parallel",),
            # Generous for these sizes; re-derive (roughly halve) for v7x's
            # 64 MiB VMEM when scaling L/C, and single-buffer the weights.
            vmem_limit_bytes=32 * 1024 * 1024),
    )(*inputs)


# ---------------------------------------------------------------------------
# Parameter init (weight-norm conv == plain conv with the effective weight).
# ---------------------------------------------------------------------------
def init_block_params(key, c_in, c_out, k, dilation):
    k1, k2, k3, k4, k5, k6 = jax.random.split(key, 6)
    # layout: w[j, c_in, c_out] == torch Conv1d weight[c_out, c_in, j]
    w1 = 0.1 * jax.random.normal(k1, (k, c_in, c_out), jnp.float32)
    b1 = 0.1 * jax.random.normal(k2, (1, c_out), jnp.float32)
    w2 = 0.1 * jax.random.normal(k3, (k, c_out, c_out), jnp.float32)
    b2 = 0.1 * jax.random.normal(k4, (1, c_out), jnp.float32)
    if c_in != c_out:
        wres = 0.1 * jax.random.normal(k5, (c_in, c_out), jnp.float32)
        bres = 0.1 * jax.random.normal(k6, (1, c_out), jnp.float32)
    else:
        wres = bres = None  # torch upordownsample is None -> identity residual
    return dict(w1=w1, b1=b1, w2=w2, b2=b2, wres=wres, bres=bres,
                c_in=c_in, c_out=c_out, k=k, dilation=dilation)


# ---------------------------------------------------------------------------
# Pure-JAX f32 reference (per-tap dilated convs) for a correctness check.
# ---------------------------------------------------------------------------
def causal_cnn_reference(x_bcl, blocks):
    x = jnp.transpose(x_bcl, (0, 2, 1)).astype(jnp.float32)  # (B, L, C)
    B, L, _ = x.shape
    for blk in blocks:
        k, dil = blk["k"], blk["dilation"]
        pad = (k - 1) * dil

        def conv(inp, w, b):
            xp = jnp.pad(inp, ((0, 0), (pad, 0), (0, 0)))
            out = jnp.zeros((B, L, w.shape[2]), jnp.float32) + b
            for j in range(k):
                out = out + jnp.einsum(
                    "blc,co->blo", xp[:, j * dil:j * dil + L, :], w[j])
            return out

        h = _leaky(conv(x, blk["w1"], blk["b1"]))
        h = _leaky(conv(h, blk["w2"], blk["b2"]))
        if blk["wres"] is None:
            res = x
        else:
            res = jnp.einsum("blc,co->blo", x, blk["wres"]) + blk["bres"]
        x = h + res
    return jnp.transpose(x, (0, 2, 1))


if __name__ == "__main__":
    B, L = 2, 16
    channels_cnn = (4, 8, 8)   # CausalCNN(*channels_cnn, kernel_size=6)
    kernel_size = 6

    key = jax.random.PRNGKey(0)
    key, kx = jax.random.split(key)
    # Input matches the torch module: (B, C_in, L).
    x = jax.random.normal(kx, (B, channels_cnn[0], L), jnp.float32)

    blocks = []
    dilation = 1
    for c_in, c_out in zip(channels_cnn, channels_cnn[1:]):
        key, kb = jax.random.split(key)
        blocks.append(init_block_params(kb, c_in, c_out, kernel_size, dilation))
        dilation *= 2

    out = jax.block_until_ready(causal_cnn_forward(x, blocks))
    assert out.shape == (B, channels_cnn[-1], L), out.shape
    assert bool(jnp.all(jnp.isfinite(out)))

    # Structural-correctness check against an independent f32 reference
    # (tolerance covers bf16 matmul-operand rounding; bugs would be O(1)).
    ref = causal_cnn_reference(x, blocks)
    max_err = float(jnp.max(jnp.abs(out - ref)))
    assert max_err < 5e-2, f"max |kernel - reference| = {max_err}"

    print("KERNEL_OK")
</pallas_src>

<mosaic_0001>
module attributes {stable_mosaic.version = 11 : i64} {
  func.func @_fused_causal_cnn_kernel(%arg0: i32, %arg1: memref<2x4x16xf32, #tpu.memory_space<vmem>>, %arg2: memref<6x4x8xbf16, #tpu.memory_space<vmem>>, %arg3: memref<1x8xf32, #tpu.memory_space<vmem>>, %arg4: memref<6x8x8xbf16, #tpu.memory_space<vmem>>, %arg5: memref<1x8xf32, #tpu.memory_space<vmem>>, %arg6: memref<4x8xbf16, #tpu.memory_space<vmem>>, %arg7: memref<1x8xf32, #tpu.memory_space<vmem>>, %arg8: memref<6x8x8xbf16, #tpu.memory_space<vmem>>, %arg9: memref<1x8xf32, #tpu.memory_space<vmem>>, %arg10: memref<6x8x8xbf16, #tpu.memory_space<vmem>>, %arg11: memref<1x8xf32, #tpu.memory_space<vmem>>, %arg12: memref<2x8x16xf32, #tpu.memory_space<vmem>>) attributes {dimension_semantics = [#tpu.dimension_semantics<parallel>], iteration_bounds = array<i64: 1>, scalar_prefetch = 0 : i64, scratch_operands = 0 : i64, tpu.core_type = #tpu.core_type<tc>, window_params = [{transform_indices = @transform_0, window_bounds = array<i64: 2, 4, 16>}, {pipeline_mode = #tpu.pipeline_mode<synchronous>, transform_indices = @transform_1, window_bounds = array<i64: 6, 4, 8>}, {pipeline_mode = #tpu.pipeline_mode<synchronous>, transform_indices = @transform_2, window_bounds = array<i64: 1, 8>}, {pipeline_mode = #tpu.pipeline_mode<synchronous>, transform_indices = @transform_3, window_bounds = array<i64: 6, 8, 8>}, {pipeline_mode = #tpu.pipeline_mode<synchronous>, transform_indices = @transform_4, window_bounds = array<i64: 1, 8>}, {pipeline_mode = #tpu.pipeline_mode<synchronous>, transform_indices = @transform_5, window_bounds = array<i64: 4, 8>}, {pipeline_mode = #tpu.pipeline_mode<synchronous>, transform_indices = @transform_6, window_bounds = array<i64: 1, 8>}, {pipeline_mode = #tpu.pipeline_mode<synchronous>, transform_indices = @transform_7, window_bounds = array<i64: 6, 8, 8>}, {pipeline_mode = #tpu.pipeline_mode<synchronous>, transform_indices = @transform_8, window_bounds = array<i64: 1, 8>}, {pipeline_mode = #tpu.pipeline_mode<synchronous>, transform_indices = @transform_9, window_bounds = array<i64: 6, 8, 8>}, {pipeline_mode = #tpu.pipeline_mode<synchronous>, transform_indices = @transform_10, window_bounds = array<i64: 1, 8>}, {transform_indices = @transform_11, window_bounds = array<i64: 2, 8, 16>}]} {
    %c0 = arith.constant 0 : index
    %c0_0 = arith.constant 0 : index
    %c0_1 = arith.constant 0 : index
    %0 = vector.load %arg1[%c0, %c0_0, %c0_1] : memref<2x4x16xf32, #tpu.memory_space<vmem>>, vector<2x4x16xf32>
    %1 = tpu.transpose %0, [0, 2, 1] : vector<2x4x16xf32> -> vector<2x16x4xf32>
    %2 = vector.shape_cast %1 : vector<2x16x4xf32> to vector<32x4xf32>
    %3 = tpu.iota {dimensions = array<i32: 0>} : vector<32x1xi32>
    %c16_i32 = arith.constant 16 : i32
    %c0_i32 = arith.constant 0 : i32
    %4 = arith.cmpi eq, %c16_i32, %c0_i32 : i32
    %c1_i32 = arith.constant 1 : i32
    %5 = arith.select %4, %c1_i32, %c16_i32 : i32
    %6 = vector.broadcast %5 : i32 to vector<32x1xi32>
    %7 = arith.remsi %3, %6 : vector<32x1xi32>
    %c0_i32_2 = arith.constant 0 : i32
    %8 = vector.broadcast %c0_i32_2 : i32 to vector<32x1xi32>
    %9 = arith.cmpi ne, %7, %8 : vector<32x1xi32>
    %c0_i32_3 = arith.constant 0 : i32
    %10 = vector.broadcast %c0_i32_3 : i32 to vector<32x1xi32>
    %11 = arith.cmpi slt, %7, %10 : vector<32x1xi32>
    %c0_i32_4 = arith.constant 0 : i32
    %12 = arith.cmpi slt, %5, %c0_i32_4 : i32
    %13 = vector.broadcast %12 : i1 to vector<32x1xi1>
    %14 = vector.broadcast %13 : vector<32x1xi1> to vector<32x1xi1>
    %15 = arith.xori %11, %14 : vector<32x1xi1>
    %16 = arith.andi %15, %9 : vector<32x1xi1>
    %17 = vector.broadcast %5 : i32 to vector<32x1xi32>
    %18 = arith.addi %7, %17 : vector<32x1xi32>
    %19 = arith.select %16, %18, %7 : vector<32x1xi1>, vector<32x1xi32>
    %c0_5 = arith.constant 0 : index
    %c0_6 = arith.constant 0 : index
    %c0_7 = arith.constant 0 : index
    %20 = vector.load %arg2[%c0_5, %c0_6, %c0_7] : memref<6x4x8xbf16, #tpu.memory_space<vmem>>, vector<6x4x8xbf16>
    %21 = arith.truncf %2 : vector<32x4xf32> to vector<32x4xbf16>
    %22 = vector.extract_strided_slice %20 {offsets = [5, 0, 0], sizes = [1, 4, 8], strides = [1, 1, 1]} : vector<6x4x8xbf16> to vector<1x4x8xbf16>
    %23 = vector.shape_cast %22 : vector<1x4x8xbf16> to vector<4x8xbf16>
    %cst = arith.constant dense<0.000000e+00> : vector<32x8xf32>
    %24 = tpu.matmul %21, %23, %cst {dimension_numbers = #tpu.dot_dimension_numbers<[1], [0], [0], [1], [0, 0, 1, 1], [], []>} : vector<32x4xbf16>, vector<4x8xbf16>, vector<32x8xf32> -> vector<32x8xf32>
    %c5_i32 = arith.constant 5 : i32
    %25 = vector.broadcast %c5_i32 : i32 to vector<32x1xi32>
    %26 = arith.cmpi sge, %19, %25 : vector<32x1xi32>
    %c5_i32_8 = arith.constant 5 : i32
    %27 = tpu.dynamic_rotate %2 by %c5_i32_8 dim 0 : vector<32x4xf32>, i32 -> vector<32x4xf32>
    %cst_9 = arith.constant 0.000000e+00 : f32
    %28 = vector.shape_cast %26 : vector<32x1xi1> to vector<32x1xi1>
    %29 = vector.broadcast %28 : vector<32x1xi1> to vector<32x4xi1>
    %30 = vector.broadcast %cst_9 : f32 to vector<32x4xf32>
    %31 = arith.select %29, %27, %30 : vector<32x4xi1>, vector<32x4xf32>
    %32 = arith.truncf %31 : vector<32x4xf32> to vector<32x4xbf16>
    %33 = vector.extract_strided_slice %20 {offsets = [0, 0, 0], sizes = [1, 4, 8], strides = [1, 1, 1]} : vector<6x4x8xbf16> to vector<1x4x8xbf16>
    %34 = vector.shape_cast %33 : vector<1x4x8xbf16> to vector<4x8xbf16>
    %cst_10 = arith.constant dense<0.000000e+00> : vector<32x8xf32>
    %35 = tpu.matmul %32, %34, %cst_10 {dimension_numbers = #tpu.dot_dimension_numbers<[1], [0], [0], [1], [0, 0, 1, 1], [], []>} : vector<32x4xbf16>, vector<4x8xbf16>, vector<32x8xf32> -> vector<32x8xf32>
    %36 = arith.addf %24, %35 : vector<32x8xf32>
    %c4_i32 = arith.constant 4 : i32
    %37 = vector.broadcast %c4_i32 : i32 to vector<32x1xi32>
    %38 = arith.cmpi sge, %19, %37 : vector<32x1xi32>
    %c4_i32_11 = arith.constant 4 : i32
    %39 = tpu.dynamic_rotate %2 by %c4_i32_11 dim 0 : vector<32x4xf32>, i32 -> vector<32x4xf32>
    %cst_12 = arith.constant 0.000000e+00 : f32
    %40 = vector.shape_cast %38 : vector<32x1xi1> to vector<32x1xi1>
    %41 = vector.broadcast %40 : vector<32x1xi1> to vector<32x4xi1>
    %42 = vector.broadcast %cst_12 : f32 to vector<32x4xf32>
    %43 = arith.select %41, %39, %42 : vector<32x4xi1>, vector<32x4xf32>
    %44 = arith.truncf %43 : vector<32x4xf32> to vector<32x4xbf16>
    %45 = vector.extract_strided_slice %20 {offsets = [1, 0, 0], sizes = [1, 4, 8], strides = [1, 1, 1]} : vector<6x4x8xbf16> to vector<1x4x8xbf16>
    %46 = vector.shape_cast %45 : vector<1x4x8xbf16> to vector<4x8xbf16>
    %cst_13 = arith.constant dense<0.000000e+00> : vector<32x8xf32>
    %47 = tpu.matmul %44, %46, %cst_13 {dimension_numbers = #tpu.dot_dimension_numbers<[1], [0], [0], [1], [0, 0, 1, 1], [], []>} : vector<32x4xbf16>, vector<4x8xbf16>, vector<32x8xf32> -> vector<32x8xf32>
    %48 = arith.addf %36, %47 : vector<32x8xf32>
    %c3_i32 = arith.constant 3 : i32
    %49 = vector.broadcast %c3_i32 : i32 to vector<32x1xi32>
    %50 = arith.cmpi sge, %19, %49 : vector<32x1xi32>
    %c3_i32_14 = arith.constant 3 : i32
    %51 = tpu.dynamic_rotate %2 by %c3_i32_14 dim 0 : vector<32x4xf32>, i32 -> vector<32x4xf32>
    %cst_15 = arith.constant 0.000000e+00 : f32
    %52 = vector.shape_cast %50 : vector<32x1xi1> to vector<32x1xi1>
    %53 = vector.broadcast %52 : vector<32x1xi1> to vector<32x4xi1>
    %54 = vector.broadcast %cst_15 : f32 to vector<32x4xf32>
    %55 = arith.select %53, %51, %54 : vector<32x4xi1>, vector<32x4xf32>
    %56 = arith.truncf %55 : vector<32x4xf32> to vector<32x4xbf16>
    %57 = vector.extract_strided_slice %20 {offsets = [2, 0, 0], sizes = [1, 4, 8], strides = [1, 1, 1]} : vector<6x4x8xbf16> to vector<1x4x8xbf16>
    %58 = vector.shape_cast %57 : vector<1x4x8xbf16> to vector<4x8xbf16>
    %cst_16 = arith.constant dense<0.000000e+00> : vector<32x8xf32>
    %59 = tpu.matmul %56, %58, %cst_16 {dimension_numbers = #tpu.dot_dimension_numbers<[1], [0], [0], [1], [0, 0, 1, 1], [], []>} : vector<32x4xbf16>, vector<4x8xbf16>, vector<32x8xf32> -> vector<32x8xf32>
    %60 = arith.addf %48, %59 : vector<32x8xf32>
    %c2_i32 = arith.constant 2 : i32
    %61 = vector.broadcast %c2_i32 : i32 to vector<32x1xi32>
    %62 = arith.cmpi sge, %19, %61 : vector<32x1xi32>
    %c2_i32_17 = arith.constant 2 : i32
    %63 = tpu.dynamic_rotate %2 by %c2_i32_17 dim 0 : vector<32x4xf32>, i32 -> vector<32x4xf32>
    %cst_18 = arith.constant 0.000000e+00 : f32
    %64 = vector.shape_cast %62 : vector<32x1xi1> to vector<32x1xi1>
    %65 = vector.broadcast %64 : vector<32x1xi1> to vector<32x4xi1>
    %66 = vector.broadcast %cst_18 : f32 to vector<32x4xf32>
    %67 = arith.select %65, %63, %66 : vector<32x4xi1>, vector<32x4xf32>
    %68 = arith.truncf %67 : vector<32x4xf32> to vector<32x4xbf16>
    %69 = vector.extract_strided_slice %20 {offsets = [3, 0, 0], sizes = [1, 4, 8], strides = [1, 1, 1]} : vector<6x4x8xbf16> to vector<1x4x8xbf16>
    %70 = vector.shape_cast %69 : vector<1x4x8xbf16> to vector<4x8xbf16>
    %cst_19 = arith.constant dense<0.000000e+00> : vector<32x8xf32>
    %71 = tpu.matmul %68, %70, %cst_19 {dimension_numbers = #tpu.dot_dimension_numbers<[1], [0], [0], [1], [0, 0, 1, 1], [], []>} : vector<32x4xbf16>, vector<4x8xbf16>, vector<32x8xf32> -> vector<32x8xf32>
    %72 = arith.addf %60, %71 : vector<32x8xf32>
    %c1_i32_20 = arith.constant 1 : i32
    %73 = vector.broadcast %c1_i32_20 : i32 to vector<32x1xi32>
    %74 = arith.cmpi sge, %19, %73 : vector<32x1xi32>
    %c1_i32_21 = arith.constant 1 : i32
    %75 = tpu.dynamic_rotate %2 by %c1_i32_21 dim 0 : vector<32x4xf32>, i32 -> vector<32x4xf32>
    %cst_22 = arith.constant 0.000000e+00 : f32
    %76 = vector.shape_cast %74 : vector<32x1xi1> to vector<32x1xi1>
    %77 = vector.broadcast %76 : vector<32x1xi1> to vector<32x4xi1>
    %78 = vector.broadcast %cst_22 : f32 to vector<32x4xf32>
    %79 = arith.select %77, %75, %78 : vector<32x4xi1>, vector<32x4xf32>
    %80 = arith.truncf %79 : vector<32x4xf32> to vector<32x4xbf16>
    %81 = vector.extract_strided_slice %20 {offsets = [4, 0, 0], sizes = [1, 4, 8], strides = [1, 1, 1]} : vector<6x4x8xbf16> to vector<1x4x8xbf16>
    %82 = vector.shape_cast %81 : vector<1x4x8xbf16> to vector<4x8xbf16>
    %cst_23 = arith.constant dense<0.000000e+00> : vector<32x8xf32>
    %83 = tpu.matmul %80, %82, %cst_23 {dimension_numbers = #tpu.dot_dimension_numbers<[1], [0], [0], [1], [0, 0, 1, 1], [], []>} : vector<32x4xbf16>, vector<4x8xbf16>, vector<32x8xf32> -> vector<32x8xf32>
    %84 = arith.addf %72, %83 : vector<32x8xf32>
    %c0_24 = arith.constant 0 : index
    %c0_25 = arith.constant 0 : index
    %85 = vector.load %arg3[%c0_24, %c0_25] : memref<1x8xf32, #tpu.memory_space<vmem>>, vector<1x8xf32>
    %86 = vector.broadcast %85 : vector<1x8xf32> to vector<32x8xf32>
    %87 = arith.addf %84, %86 : vector<32x8xf32>
    %cst_26 = arith.constant 0.000000e+00 : f32
    %88 = vector.broadcast %cst_26 : f32 to vector<32x8xf32>
    %89 = arith.cmpf ogt, %87, %88 : vector<32x8xf32>
    %cst_27 = arith.constant 0.00999999977 : f32
    %90 = vector.broadcast %cst_27 : f32 to vector<32x8xf32>
    %91 = arith.mulf %90, %87 : vector<32x8xf32>
    %92 = arith.select %89, %87, %91 : vector<32x8xi1>, vector<32x8xf32>
    %c0_28 = arith.constant 0 : index
    %c0_29 = arith.constant 0 : index
    %c0_30 = arith.constant 0 : index
    %93 = vector.load %arg4[%c0_28, %c0_29, %c0_30] : memref<6x8x8xbf16, #tpu.memory_space<vmem>>, vector<6x8x8xbf16>
    %94 = arith.truncf %92 : vector<32x8xf32> to vector<32x8xbf16>
    %95 = vector.extract_strided_slice %93 {offsets = [5, 0, 0], sizes = [1, 8, 8], strides = [1, 1, 1]} : vector<6x8x8xbf16> to vector<1x8x8xbf16>
    %96 = vector.shape_cast %95 : vector<1x8x8xbf16> to vector<8x8xbf16>
    %cst_31 = arith.constant dense<0.000000e+00> : vector<32x8xf32>
    %97 = tpu.matmul %94, %96, %cst_31 {dimension_numbers = #tpu.dot_dimension_numbers<[1], [0], [0], [1], [0, 0, 1, 1], [], []>} : vector<32x8xbf16>, vector<8x8xbf16>, vector<32x8xf32> -> vector<32x8xf32>
    %c5_i32_32 = arith.constant 5 : i32
    %98 = vector.broadcast %c5_i32_32 : i32 to vector<32x1xi32>
    %99 = arith.cmpi sge, %19, %98 : vector<32x1xi32>
    %c5_i32_33 = arith.constant 5 : i32
    %100 = tpu.dynamic_rotate %92 by %c5_i32_33 dim 0 : vector<32x8xf32>, i32 -> vector<32x8xf32>
    %cst_34 = arith.constant 0.000000e+00 : f32
    %101 = vector.shape_cast %99 : vector<32x1xi1> to vector<32x1xi1>
    %102 = vector.broadcast %101 : vector<32x1xi1> to vector<32x8xi1>
    %103 = vector.broadcast %cst_34 : f32 to vector<32x8xf32>
    %104 = arith.select %102, %100, %103 : vector<32x8xi1>, vector<32x8xf32>
    %105 = arith.truncf %104 : vector<32x8xf32> to vector<32x8xbf16>
    %106 = vector.extract_strided_slice %93 {offsets = [0, 0, 0], sizes = [1, 8, 8], strides = [1, 1, 1]} : vector<6x8x8xbf16> to vector<1x8x8xbf16>
    %107 = vector.shape_cast %106 : vector<1x8x8xbf16> to vector<8x8xbf16>
    %cst_35 = arith.constant dense<0.000000e+00> : vector<32x8xf32>
    %108 = tpu.matmul %105, %107, %cst_35 {dimension_numbers = #tpu.dot_dimension_numbers<[1], [0], [0], [1], [0, 0, 1, 1], [], []>} : vector<32x8xbf16>, vector<8x8xbf16>, vector<32x8xf32> -> vector<32x8xf32>
    %109 = arith.addf %97, %108 : vector<32x8xf32>
    %c4_i32_36 = arith.constant 4 : i32
    %110 = vector.broadcast %c4_i32_36 : i32 to vector<32x1xi32>
    %111 = arith.cmpi sge, %19, %110 : vector<32x1xi32>
    %c4_i32_37 = arith.constant 4 : i32
    %112 = tpu.dynamic_rotate %92 by %c4_i32_37 dim 0 : vector<32x8xf32>, i32 -> vector<32x8xf32>
    %cst_38 = arith.constant 0.000000e+00 : f32
    %113 = vector.shape_cast %111 : vector<32x1xi1> to vector<32x1xi1>
    %114 = vector.broadcast %113 : vector<32x1xi1> to vector<32x8xi1>
    %115 = vector.broadcast %cst_38 : f32 to vector<32x8xf32>
    %116 = arith.select %114, %112, %115 : vector<32x8xi1>, vector<32x8xf32>
    %117 = arith.truncf %116 : vector<32x8xf32> to vector<32x8xbf16>
    %118 = vector.extract_strided_slice %93 {offsets = [1, 0, 0], sizes = [1, 8, 8], strides = [1, 1, 1]} : vector<6x8x8xbf16> to vector<1x8x8xbf16>
    %119 = vector.shape_cast %118 : vector<1x8x8xbf16> to vector<8x8xbf16>
    %cst_39 = arith.constant dense<0.000000e+00> : vector<32x8xf32>
    %120 = tpu.matmul %117, %119, %cst_39 {dimension_numbers = #tpu.dot_dimension_numbers<[1], [0], [0], [1], [0, 0, 1, 1], [], []>} : vector<32x8xbf16>, vector<8x8xbf16>, vector<32x8xf32> -> vector<32x8xf32>
    %121 = arith.addf %109, %120 : vector<32x8xf32>
    %c3_i32_40 = arith.constant 3 : i32
    %122 = vector.broadcast %c3_i32_40 : i32 to vector<32x1xi32>
    %123 = arith.cmpi sge, %19, %122 : vector<32x1xi32>
    %c3_i32_41 = arith.constant 3 : i32
    %124 = tpu.dynamic_rotate %92 by %c3_i32_41 dim 0 : vector<32x8xf32>, i32 -> vector<32x8xf32>
    %cst_42 = arith.constant 0.000000e+00 : f32
    %125 = vector.shape_cast %123 : vector<32x1xi1> to vector<32x1xi1>
    %126 = vector.broadcast %125 : vector<32x1xi1> to vector<32x8xi1>
    %127 = vector.broadcast %cst_42 : f32 to vector<32x8xf32>
    %128 = arith.select %126, %124, %127 : vector<32x8xi1>, vector<32x8xf32>
    %129 = arith.truncf %128 : vector<32x8xf32> to vector<32x8xbf16>
    %130 = vector.extract_strided_slice %93 {offsets = [2, 0, 0], sizes = [1, 8, 8], strides = [1, 1, 1]} : vector<6x8x8xbf16> to vector<1x8x8xbf16>
    %131 = vector.shape_cast %130 : vector<1x8x8xbf16> to vector<8x8xbf16>
    %cst_43 = arith.constant dense<0.000000e+00> : vector<32x8xf32>
    %132 = tpu.matmul %129, %131, %cst_43 {dimension_numbers = #tpu.dot_dimension_numbers<[1], [0], [0], [1], [0, 0, 1, 1], [], []>} : vector<32x8xbf16>, vector<8x8xbf16>, vector<32x8xf32> -> vector<32x8xf32>
    %133 = arith.addf %121, %132 : vector<32x8xf32>
    %c2_i32_44 = arith.constant 2 : i32
    %134 = vector.broadcast %c2_i32_44 : i32 to vector<32x1xi32>
    %135 = arith.cmpi sge, %19, %134 : vector<32x1xi32>
    %c2_i32_45 = arith.constant 2 : i32
    %136 = tpu.dynamic_rotate %92 by %c2_i32_45 dim 0 : vector<32x8xf32>, i32 -> vector<32x8xf32>
    %cst_46 = arith.constant 0.000000e+00 : f32
    %137 = vector.shape_cast %135 : vector<32x1xi1> to vector<32x1xi1>
    %138 = vector.broadcast %137 : vector<32x1xi1> to vector<32x8xi1>
    %139 = vector.broadcast %cst_46 : f32 to vector<32x8xf32>
    %140 = arith.select %138, %136, %139 : vector<32x8xi1>, vector<32x8xf32>
    %141 = arith.truncf %140 : vector<32x8xf32> to vector<32x8xbf16>
    %142 = vector.extract_strided_slice %93 {offsets = [3, 0, 0], sizes = [1, 8, 8], strides = [1, 1, 1]} : vector<6x8x8xbf16> to vector<1x8x8xbf16>
    %143 = vector.shape_cast %142 : vector<1x8x8xbf16> to vector<8x8xbf16>
    %cst_47 = arith.constant dense<0.000000e+00> : vector<32x8xf32>
    %144 = tpu.matmul %141, %143, %cst_47 {dimension_numbers = #tpu.dot_dimension_numbers<[1], [0], [0], [1], [0, 0, 1, 1], [], []>} : vector<32x8xbf16>, vector<8x8xbf16>, vector<32x8xf32> -> vector<32x8xf32>
    %145 = arith.addf %133, %144 : vector<32x8xf32>
    %c1_i32_48 = arith.constant 1 : i32
    %146 = vector.broadcast %c1_i32_48 : i32 to vector<32x1xi32>
    %147 = arith.cmpi sge, %19, %146 : vector<32x1xi32>
    %c1_i32_49 = arith.constant 1 : i32
    %148 = tpu.dynamic_rotate %92 by %c1_i32_49 dim 0 : vector<32x8xf32>, i32 -> vector<32x8xf32>
    %cst_50 = arith.constant 0.000000e+00 : f32
    %149 = vector.shape_cast %147 : vector<32x1xi1> to vector<32x1xi1>
    %150 = vector.broadcast %149 : vector<32x1xi1> to vector<32x8xi1>
    %151 = vector.broadcast %cst_50 : f32 to vector<32x8xf32>
    %152 = arith.select %150, %148, %151 : vector<32x8xi1>, vector<32x8xf32>
    %153 = arith.truncf %152 : vector<32x8xf32> to vector<32x8xbf16>
    %154 = vector.extract_strided_slice %93 {offsets = [4, 0, 0], sizes = [1, 8, 8], strides = [1, 1, 1]} : vector<6x8x8xbf16> to vector<1x8x8xbf16>
    %155 = vector.shape_cast %154 : vector<1x8x8xbf16> to vector<8x8xbf16>
    %cst_51 = arith.constant dense<0.000000e+00> : vector<32x8xf32>
    %156 = tpu.matmul %153, %155, %cst_51 {dimension_numbers = #tpu.dot_dimension_numbers<[1], [0], [0], [1], [0, 0, 1, 1], [], []>} : vector<32x8xbf16>, vector<8x8xbf16>, vector<32x8xf32> -> vector<32x8xf32>
    %157 = arith.addf %145, %156 : vector<32x8xf32>
    %c0_52 = arith.constant 0 : index
    %c0_53 = arith.constant 0 : index
    %158 = vector.load %arg5[%c0_52, %c0_53] : memref<1x8xf32, #tpu.memory_space<vmem>>, vector<1x8xf32>
    %159 = vector.broadcast %158 : vector<1x8xf32> to vector<32x8xf32>
    %160 = arith.addf %157, %159 : vector<32x8xf32>
    %cst_54 = arith.constant 0.000000e+00 : f32
    %161 = vector.broadcast %cst_54 : f32 to vector<32x8xf32>
    %162 = arith.cmpf ogt, %160, %161 : vector<32x8xf32>
    %cst_55 = arith.constant 0.00999999977 : f32
    %163 = vector.broadcast %cst_55 : f32 to vector<32x8xf32>
    %164 = arith.mulf %163, %160 : vector<32x8xf32>
    %165 = arith.select %162, %160, %164 : vector<32x8xi1>, vector<32x8xf32>
    %166 = arith.truncf %2 : vector<32x4xf32> to vector<32x4xbf16>
    %c0_56 = arith.constant 0 : index
    %c0_57 = arith.constant 0 : index
    %167 = vector.load %arg6[%c0_56, %c0_57] : memref<4x8xbf16, #tpu.memory_space<vmem>>, vector<4x8xbf16>
    %cst_58 = arith.constant dense<0.000000e+00> : vector<32x8xf32>
    %168 = tpu.matmul %166, %167, %cst_58 {dimension_numbers = #tpu.dot_dimension_numbers<[1], [0], [0], [1], [0, 0, 1, 1], [], []>} : vector<32x4xbf16>, vector<4x8xbf16>, vector<32x8xf32> -> vector<32x8xf32>
    %c0_59 = arith.constant 0 : index
    %c0_60 = arith.constant 0 : index
    %169 = vector.load %arg7[%c0_59, %c0_60] : memref<1x8xf32, #tpu.memory_space<vmem>>, vector<1x8xf32>
    %170 = vector.broadcast %169 : vector<1x8xf32> to vector<32x8xf32>
    %171 = arith.addf %168, %170 : vector<32x8xf32>
    %172 = arith.addf %165, %171 : vector<32x8xf32>
    %c0_61 = arith.constant 0 : index
    %c0_62 = arith.constant 0 : index
    %c0_63 = arith.constant 0 : index
    %173 = vector.load %arg8[%c0_61, %c0_62, %c0_63] : memref<6x8x8xbf16, #tpu.memory_space<vmem>>, vector<6x8x8xbf16>
    %174 = arith.truncf %172 : vector<32x8xf32> to vector<32x8xbf16>
    %175 = vector.extract_strided_slice %173 {offsets = [5, 0, 0], sizes = [1, 8, 8], strides = [1, 1, 1]} : vector<6x8x8xbf16> to vector<1x8x8xbf16>
    %176 = vector.shape_cast %175 : vector<1x8x8xbf16> to vector<8x8xbf16>
    %cst_64 = arith.constant dense<0.000000e+00> : vector<32x8xf32>
    %177 = tpu.matmul %174, %176, %cst_64 {dimension_numbers = #tpu.dot_dimension_numbers<[1], [0], [0], [1], [0, 0, 1, 1], [], []>} : vector<32x8xbf16>, vector<8x8xbf16>, vector<32x8xf32> -> vector<32x8xf32>
    %c10_i32 = arith.constant 10 : i32
    %178 = vector.broadcast %c10_i32 : i32 to vector<32x1xi32>
    %179 = arith.cmpi sge, %19, %178 : vector<32x1xi32>
    %c10_i32_65 = arith.constant 10 : i32
    %180 = tpu.dynamic_rotate %172 by %c10_i32_65 dim 0 : vector<32x8xf32>, i32 -> vector<32x8xf32>
    %cst_66 = arith.constant 0.000000e+00 : f32
    %181 = vector.shape_cast %179 : vector<32x1xi1> to vector<32x1xi1>
    %182 = vector.broadcast %181 : vector<32x1xi1> to vector<32x8xi1>
    %183 = vector.broadcast %cst_66 : f32 to vector<32x8xf32>
    %184 = arith.select %182, %180, %183 : vector<32x8xi1>, vector<32x8xf32>
    %185 = arith.truncf %184 : vector<32x8xf32> to vector<32x8xbf16>
    %186 = vector.extract_strided_slice %173 {offsets = [0, 0, 0], sizes = [1, 8, 8], strides = [1, 1, 1]} : vector<6x8x8xbf16> to vector<1x8x8xbf16>
    %187 = vector.shape_cast %186 : vector<1x8x8xbf16> to vector<8x8xbf16>
    %cst_67 = arith.constant dense<0.000000e+00> : vector<32x8xf32>
    %188 = tpu.matmul %185, %187, %cst_67 {dimension_numbers = #tpu.dot_dimension_numbers<[1], [0], [0], [1], [0, 0, 1, 1], [], []>} : vector<32x8xbf16>, vector<8x8xbf16>, vector<32x8xf32> -> vector<32x8xf32>
    %189 = arith.addf %177, %188 : vector<32x8xf32>
    %c8_i32 = arith.constant 8 : i32
    %190 = vector.broadcast %c8_i32 : i32 to vector<32x1xi32>
    %191 = arith.cmpi sge, %19, %190 : vector<32x1xi32>
    %c8_i32_68 = arith.constant 8 : i32
    %192 = tpu.dynamic_rotate %172 by %c8_i32_68 dim 0 : vector<32x8xf32>, i32 -> vector<32x8xf32>
    %cst_69 = arith.constant 0.000000e+00 : f32
    %193 = vector.shape_cast %191 : vector<32x1xi1> to vector<32x1xi1>
    %194 = vector.broadcast %193 : vector<32x1xi1> to vector<32x8xi1>
    %195 = vector.broadcast %cst_69 : f32 to vector<32x8xf32>
    %196 = arith.select %194, %192, %195 : vector<32x8xi1>, vector<32x8xf32>
    %197 = arith.truncf %196 : vector<32x8xf32> to vector<32x8xbf16>
    %198 = vector.extract_strided_slice %173 {offsets = [1, 0, 0], sizes = [1, 8, 8], strides = [1, 1, 1]} : vector<6x8x8xbf16> to vector<1x8x8xbf16>
    %199 = vector.shape_cast %198 : vector<1x8x8xbf16> to vector<8x8xbf16>
    %cst_70 = arith.constant dense<0.000000e+00> : vector<32x8xf32>
    %200 = tpu.matmul %197, %199, %cst_70 {dimension_numbers = #tpu.dot_dimension_numbers<[1], [0], [0], [1], [0, 0, 1, 1], [], []>} : vector<32x8xbf16>, vector<8x8xbf16>, vector<32x8xf32> -> vector<32x8xf32>
    %201 = arith.addf %189, %200 : vector<32x8xf32>
    %c6_i32 = arith.constant 6 : i32
    %202 = vector.broadcast %c6_i32 : i32 to vector<32x1xi32>
    %203 = arith.cmpi sge, %19, %202 : vector<32x1xi32>
    %c6_i32_71 = arith.constant 6 : i32
    %204 = tpu.dynamic_rotate %172 by %c6_i32_71 dim 0 : vector<32x8xf32>, i32 -> vector<32x8xf32>
    %cst_72 = arith.constant 0.000000e+00 : f32
    %205 = vector.shape_cast %203 : vector<32x1xi1> to vector<32x1xi1>
    %206 = vector.broadcast %205 : vector<32x1xi1> to vector<32x8xi1>
    %207 = vector.broadcast %cst_72 : f32 to vector<32x8xf32>
    %208 = arith.select %206, %204, %207 : vector<32x8xi1>, vector<32x8xf32>
    %209 = arith.truncf %208 : vector<32x8xf32> to vector<32x8xbf16>
    %210 = vector.extract_strided_slice %173 {offsets = [2, 0, 0], sizes = [1, 8, 8], strides = [1, 1, 1]} : vector<6x8x8xbf16> to vector<1x8x8xbf16>
    %211 = vector.shape_cast %210 : vector<1x8x8xbf16> to vector<8x8xbf16>
    %cst_73 = arith.constant dense<0.000000e+00> : vector<32x8xf32>
    %212 = tpu.matmul %209, %211, %cst_73 {dimension_numbers = #tpu.dot_dimension_numbers<[1], [0], [0], [1], [0, 0, 1, 1], [], []>} : vector<32x8xbf16>, vector<8x8xbf16>, vector<32x8xf32> -> vector<32x8xf32>
    %213 = arith.addf %201, %212 : vector<32x8xf32>
    %c4_i32_74 = arith.constant 4 : i32
    %214 = vector.broadcast %c4_i32_74 : i32 to vector<32x1xi32>
    %215 = arith.cmpi sge, %19, %214 : vector<32x1xi32>
    %c4_i32_75 = arith.constant 4 : i32
    %216 = tpu.dynamic_rotate %172 by %c4_i32_75 dim 0 : vector<32x8xf32>, i32 -> vector<32x8xf32>
    %cst_76 = arith.constant 0.000000e+00 : f32
    %217 = vector.shape_cast %215 : vector<32x1xi1> to vector<32x1xi1>
    %218 = vector.broadcast %217 : vector<32x1xi1> to vector<32x8xi1>
    %219 = vector.broadcast %cst_76 : f32 to vector<32x8xf32>
    %220 = arith.select %218, %216, %219 : vector<32x8xi1>, vector<32x8xf32>
    %221 = arith.truncf %220 : vector<32x8xf32> to vector<32x8xbf16>
    %222 = vector.extract_strided_slice %173 {offsets = [3, 0, 0], sizes = [1, 8, 8], strides = [1, 1, 1]} : vector<6x8x8xbf16> to vector<1x8x8xbf16>
    %223 = vector.shape_cast %222 : vector<1x8x8xbf16> to vector<8x8xbf16>
    %cst_77 = arith.constant dense<0.000000e+00> : vector<32x8xf32>
    %224 = tpu.matmul %221, %223, %cst_77 {dimension_numbers = #tpu.dot_dimension_numbers<[1], [0], [0], [1], [0, 0, 1, 1], [], []>} : vector<32x8xbf16>, vector<8x8xbf16>, vector<32x8xf32> -> vector<32x8xf32>
    %225 = arith.addf %213, %224 : vector<32x8xf32>
    %c2_i32_78 = arith.constant 2 : i32
    %226 = vector.broadcast %c2_i32_78 : i32 to vector<32x1xi32>
    %227 = arith.cmpi sge, %19, %226 : vector<32x1xi32>
    %c2_i32_79 = arith.constant 2 : i32
    %228 = tpu.dynamic_rotate %172 by %c2_i32_79 dim 0 : vector<32x8xf32>, i32 -> vector<32x8xf32>
    %cst_80 = arith.constant 0.000000e+00 : f32
    %229 = vector.shape_cast %227 : vector<32x1xi1> to vector<32x1xi1>
    %230 = vector.broadcast %229 : vector<32x1xi1> to vector<32x8xi1>
    %231 = vector.broadcast %cst_80 : f32 to vector<32x8xf32>
    %232 = arith.select %230, %228, %231 : vector<32x8xi1>, vector<32x8xf32>
    %233 = arith.truncf %232 : vector<32x8xf32> to vector<32x8xbf16>
    %234 = vector.extract_strided_slice %173 {offsets = [4, 0, 0], sizes = [1, 8, 8], strides = [1, 1, 1]} : vector<6x8x8xbf16> to vector<1x8x8xbf16>
    %235 = vector.shape_cast %234 : vector<1x8x8xbf16> to vector<8x8xbf16>
    %cst_81 = arith.constant dense<0.000000e+00> : vector<32x8xf32>
    %236 = tpu.matmul %233, %235, %cst_81 {dimension_numbers = #tpu.dot_dimension_numbers<[1], [0], [0], [1], [0, 0, 1, 1], [], []>} : vector<32x8xbf16>, vector<8x8xbf16>, vector<32x8xf32> -> vector<32x8xf32>
    %237 = arith.addf %225, %236 : vector<32x8xf32>
    %c0_82 = arith.constant 0 : index
    %c0_83 = arith.constant 0 : index
    %238 = vector.load %arg9[%c0_82, %c0_83] : memref<1x8xf32, #tpu.memory_space<vmem>>, vector<1x8xf32>
    %239 = vector.broadcast %238 : vector<1x8xf32> to vector<32x8xf32>
    %240 = arith.addf %237, %239 : vector<32x8xf32>
    %cst_84 = arith.constant 0.000000e+00 : f32
    %241 = vector.broadcast %cst_84 : f32 to vector<32x8xf32>
    %242 = arith.cmpf ogt, %240, %241 : vector<32x8xf32>
    %cst_85 = arith.constant 0.00999999977 : f32
    %243 = vector.broadcast %cst_85 : f32 to vector<32x8xf32>
    %244 = arith.mulf %243, %240 : vector<32x8xf32>
    %245 = arith.select %242, %240, %244 : vector<32x8xi1>, vector<32x8xf32>
    %c0_86 = arith.constant 0 : index
    %c0_87 = arith.constant 0 : index
    %c0_88 = arith.constant 0 : index
    %246 = vector.load %arg10[%c0_86, %c0_87, %c0_88] : memref<6x8x8xbf16, #tpu.memory_space<vmem>>, vector<6x8x8xbf16>
    %247 = arith.truncf %245 : vector<32x8xf32> to vector<32x8xbf16>
    %248 = vector.extract_strided_slice %246 {offsets = [5, 0, 0], sizes = [1, 8, 8], strides = [1, 1, 1]} : vector<6x8x8xbf16> to vector<1x8x8xbf16>
    %249 = vector.shape_cast %248 : vector<1x8x8xbf16> to vector<8x8xbf16>
    %cst_89 = arith.constant dense<0.000000e+00> : vector<32x8xf32>
    %250 = tpu.matmul %247, %249, %cst_89 {dimension_numbers = #tpu.dot_dimension_numbers<[1], [0], [0], [1], [0, 0, 1, 1], [], []>} : vector<32x8xbf16>, vector<8x8xbf16>, vector<32x8xf32> -> vector<32x8xf32>
    %c10_i32_90 = arith.constant 10 : i32
    %251 = vector.broadcast %c10_i32_90 : i32 to vector<32x1xi32>
    %252 = arith.cmpi sge, %19, %251 : vector<32x1xi32>
    %c10_i32_91 = arith.constant 10 : i32
    %253 = tpu.dynamic_rotate %245 by %c10_i32_91 dim 0 : vector<32x8xf32>, i32 -> vector<32x8xf32>
    %cst_92 = arith.constant 0.000000e+00 : f32
    %254 = vector.shape_cast %252 : vector<32x1xi1> to vector<32x1xi1>
    %255 = vector.broadcast %254 : vector<32x1xi1> to vector<32x8xi1>
    %256 = vector.broadcast %cst_92 : f32 to vector<32x8xf32>
    %257 = arith.select %255, %253, %256 : vector<32x8xi1>, vector<32x8xf32>
    %258 = arith.truncf %257 : vector<32x8xf32> to vector<32x8xbf16>
    %259 = vector.extract_strided_slice %246 {offsets = [0, 0, 0], sizes = [1, 8, 8], strides = [1, 1, 1]} : vector<6x8x8xbf16> to vector<1x8x8xbf16>
    %260 = vector.shape_cast %259 : vector<1x8x8xbf16> to vector<8x8xbf16>
    %cst_93 = arith.constant dense<0.000000e+00> : vector<32x8xf32>
    %261 = tpu.matmul %258, %260, %cst_93 {dimension_numbers = #tpu.dot_dimension_numbers<[1], [0], [0], [1], [0, 0, 1, 1], [], []>} : vector<32x8xbf16>, vector<8x8xbf16>, vector<32x8xf32> -> vector<32x8xf32>
    %262 = arith.addf %250, %261 : vector<32x8xf32>
    %c8_i32_94 = arith.constant 8 : i32
    %263 = vector.broadcast %c8_i32_94 : i32 to vector<32x1xi32>
    %264 = arith.cmpi sge, %19, %263 : vector<32x1xi32>
    %c8_i32_95 = arith.constant 8 : i32
    %265 = tpu.dynamic_rotate %245 by %c8_i32_95 dim 0 : vector<32x8xf32>, i32 -> vector<32x8xf32>
    %cst_96 = arith.constant 0.000000e+00 : f32
    %266 = vector.shape_cast %264 : vector<32x1xi1> to vector<32x1xi1>
    %267 = vector.broadcast %266 : vector<32x1xi1> to vector<32x8xi1>
    %268 = vector.broadcast %cst_96 : f32 to vector<32x8xf32>
    %269 = arith.select %267, %265, %268 : vector<32x8xi1>, vector<32x8xf32>
    %270 = arith.truncf %269 : vector<32x8xf32> to vector<32x8xbf16>
    %271 = vector.extract_strided_slice %246 {offsets = [1, 0, 0], sizes = [1, 8, 8], strides = [1, 1, 1]} : vector<6x8x8xbf16> to vector<1x8x8xbf16>
    %272 = vector.shape_cast %271 : vector<1x8x8xbf16> to vector<8x8xbf16>
    %cst_97 = arith.constant dense<0.000000e+00> : vector<32x8xf32>
    %273 = tpu.matmul %270, %272, %cst_97 {dimension_numbers = #tpu.dot_dimension_numbers<[1], [0], [0], [1], [0, 0, 1, 1], [], []>} : vector<32x8xbf16>, vector<8x8xbf16>, vector<32x8xf32> -> vector<32x8xf32>
    %274 = arith.addf %262, %273 : vector<32x8xf32>
    %c6_i32_98 = arith.constant 6 : i32
    %275 = vector.broadcast %c6_i32_98 : i32 to vector<32x1xi32>
    %276 = arith.cmpi sge, %19, %275 : vector<32x1xi32>
    %c6_i32_99 = arith.constant 6 : i32
    %277 = tpu.dynamic_rotate %245 by %c6_i32_99 dim 0 : vector<32x8xf32>, i32 -> vector<32x8xf32>
    %cst_100 = arith.constant 0.000000e+00 : f32
    %278 = vector.shape_cast %276 : vector<32x1xi1> to vector<32x1xi1>
    %279 = vector.broadcast %278 : vector<32x1xi1> to vector<32x8xi1>
    %280 = vector.broadcast %cst_100 : f32 to vector<32x8xf32>
    %281 = arith.select %279, %277, %280 : vector<32x8xi1>, vector<32x8xf32>
    %282 = arith.truncf %281 : vector<32x8xf32> to vector<32x8xbf16>
    %283 = vector.extract_strided_slice %246 {offsets = [2, 0, 0], sizes = [1, 8, 8], strides = [1, 1, 1]} : vector<6x8x8xbf16> to vector<1x8x8xbf16>
    %284 = vector.shape_cast %283 : vector<1x8x8xbf16> to vector<8x8xbf16>
    %cst_101 = arith.constant dense<0.000000e+00> : vector<32x8xf32>
    %285 = tpu.matmul %282, %284, %cst_101 {dimension_numbers = #tpu.dot_dimension_numbers<[1], [0], [0], [1], [0, 0, 1, 1], [], []>} : vector<32x8xbf16>, vector<8x8xbf16>, vector<32x8xf32> -> vector<32x8xf32>
    %286 = arith.addf %274, %285 : vector<32x8xf32>
    %c4_i32_102 = arith.constant 4 : i32
    %287 = vector.broadcast %c4_i32_102 : i32 to vector<32x1xi32>
    %288 = arith.cmpi sge, %19, %287 : vector<32x1xi32>
    %c4_i32_103 = arith.constant 4 : i32
    %289 = tpu.dynamic_rotate %245 by %c4_i32_103 dim 0 : vector<32x8xf32>, i32 -> vector<32x8xf32>
    %cst_104 = arith.constant 0.000000e+00 : f32
    %290 = vector.shape_cast %288 : vector<32x1xi1> to vector<32x1xi1>
    %291 = vector.broadcast %290 : vector<32x1xi1> to vector<32x8xi1>
    %292 = vector.broadcast %cst_104 : f32 to vector<32x8xf32>
    %293 = arith.select %291, %289, %292 : vector<32x8xi1>, vector<32x8xf32>
    %294 = arith.truncf %293 : vector<32x8xf32> to vector<32x8xbf16>
    %295 = vector.extract_strided_slice %246 {offsets = [3, 0, 0], sizes = [1, 8, 8], strides = [1, 1, 1]} : vector<6x8x8xbf16> to vector<1x8x8xbf16>
    %296 = vector.shape_cast %295 : vector<1x8x8xbf16> to vector<8x8xbf16>
    %cst_105 = arith.constant dense<0.000000e+00> : vector<32x8xf32>
    %297 = tpu.matmul %294, %296, %cst_105 {dimension_numbers = #tpu.dot_dimension_numbers<[1], [0], [0], [1], [0, 0, 1, 1], [], []>} : vector<32x8xbf16>, vector<8x8xbf16>, vector<32x8xf32> -> vector<32x8xf32>
    %298 = arith.addf %286, %297 : vector<32x8xf32>
    %c2_i32_106 = arith.constant 2 : i32
    %299 = vector.broadcast %c2_i32_106 : i32 to vector<32x1xi32>
    %300 = arith.cmpi sge, %19, %299 : vector<32x1xi32>
    %c2_i32_107 = arith.constant 2 : i32
    %301 = tpu.dynamic_rotate %245 by %c2_i32_107 dim 0 : vector<32x8xf32>, i32 -> vector<32x8xf32>
    %cst_108 = arith.constant 0.000000e+00 : f32
    %302 = vector.shape_cast %300 : vector<32x1xi1> to vector<32x1xi1>
    %303 = vector.broadcast %302 : vector<32x1xi1> to vector<32x8xi1>
    %304 = vector.broadcast %cst_108 : f32 to vector<32x8xf32>
    %305 = arith.select %303, %301, %304 : vector<32x8xi1>, vector<32x8xf32>
    %306 = arith.truncf %305 : vector<32x8xf32> to vector<32x8xbf16>
    %307 = vector.extract_strided_slice %246 {offsets = [4, 0, 0], sizes = [1, 8, 8], strides = [1, 1, 1]} : vector<6x8x8xbf16> to vector<1x8x8xbf16>
    %308 = vector.shape_cast %307 : vector<1x8x8xbf16> to vector<8x8xbf16>
    %cst_109 = arith.constant dense<0.000000e+00> : vector<32x8xf32>
    %309 = tpu.matmul %306, %308, %cst_109 {dimension_numbers = #tpu.dot_dimension_numbers<[1], [0], [0], [1], [0, 0, 1, 1], [], []>} : vector<32x8xbf16>, vector<8x8xbf16>, vector<32x8xf32> -> vector<32x8xf32>
    %310 = arith.addf %298, %309 : vector<32x8xf32>
    %c0_110 = arith.constant 0 : index
    %c0_111 = arith.constant 0 : index
    %311 = vector.load %arg11[%c0_110, %c0_111] : memref<1x8xf32, #tpu.memory_space<vmem>>, vector<1x8xf32>
    %312 = vector.broadcast %311 : vector<1x8xf32> to vector<32x8xf32>
    %313 = arith.addf %310, %312 : vector<32x8xf32>
    %cst_112 = arith.constant 0.000000e+00 : f32
    %314 = vector.broadcast %cst_112 : f32 to vector<32x8xf32>
    %315 = arith.cmpf ogt, %313, %314 : vector<32x8xf32>
    %cst_113 = arith.constant 0.00999999977 : f32
    %316 = vector.broadcast %cst_113 : f32 to vector<32x8xf32>
    %317 = arith.mulf %316, %313 : vector<32x8xf32>
    %318 = arith.select %315, %313, %317 : vector<32x8xi1>, vector<32x8xf32>
    %319 = arith.addf %318, %172 : vector<32x8xf32>
    %320 = vector.shape_cast %319 : vector<32x8xf32> to vector<2x16x8xf32>
    %321 = tpu.transpose %320, [0, 2, 1] : vector<2x16x8xf32> -> vector<2x8x16xf32>
    %c0_114 = arith.constant 0 : index
    %c0_115 = arith.constant 0 : index
    %c0_116 = arith.constant 0 : index
    %322 = vector.load %arg12[%c0_114, %c0_115, %c0_116] : memref<2x8x16xf32, #tpu.memory_space<vmem>>, vector<2x8x16xf32>
    tpu.vector_store %arg12[%c0_114, %c0_115, %c0_116], %321 {strides = array<i32>} : memref<2x8x16xf32, #tpu.memory_space<vmem>>, vector<2x8x16xf32>,
    return
  }
  func.func @transform_0(%arg0: i32) -> (i32, i32, i32) {
    %c0_i32 = arith.constant 0 : i32
    %c0_i32_0 = arith.constant 0 : i32
    %c0_i32_1 = arith.constant 0 : i32
    return %arg0, %c0_i32, %c0_i32_0 : i32, i32, i32
  }
  func.func @transform_1(%arg0: i32) -> (i32, i32, i32) {
    %c0_i32 = arith.constant 0 : i32
    %c0_i32_0 = arith.constant 0 : i32
    %c0_i32_1 = arith.constant 0 : i32
    %c0_i32_2 = arith.constant 0 : i32
    return %c0_i32, %c0_i32_0, %c0_i32_1 : i32, i32, i32
  }
  func.func @transform_2(%arg0: i32) -> (i32, i32) {
    %c0_i32 = arith.constant 0 : i32
    %c0_i32_0 = arith.constant 0 : i32
    %c0_i32_1 = arith.constant 0 : i32
    return %c0_i32, %c0_i32_0 : i32, i32
  }
  func.func @transform_3(%arg0: i32) -> (i32, i32, i32) {
    %c0_i32 = arith.constant 0 : i32
    %c0_i32_0 = arith.constant 0 : i32
    %c0_i32_1 = arith.constant 0 : i32
    %c0_i32_2 = arith.constant 0 : i32
    return %c0_i32, %c0_i32_0, %c0_i32_1 : i32, i32, i32
  }
  func.func @transform_4(%arg0: i32) -> (i32, i32) {
    %c0_i32 = arith.constant 0 : i32
    %c0_i32_0 = arith.constant 0 : i32
    %c0_i32_1 = arith.constant 0 : i32
    return %c0_i32, %c0_i32_0 : i32, i32
  }
  func.func @transform_5(%arg0: i32) -> (i32, i32) {
    %c0_i32 = arith.constant 0 : i32
    %c0_i32_0 = arith.constant 0 : i32
    %c0_i32_1 = arith.constant 0 : i32
    return %c0_i32, %c0_i32_0 : i32, i32
  }
  func.func @transform_6(%arg0: i32) -> (i32, i32) {
    %c0_i32 = arith.constant 0 : i32
    %c0_i32_0 = arith.constant 0 : i32
    %c0_i32_1 = arith.constant 0 : i32
    return %c0_i32, %c0_i32_0 : i32, i32
  }
  func.func @transform_7(%arg0: i32) -> (i32, i32, i32) {
    %c0_i32 = arith.constant 0 : i32
    %c0_i32_0 = arith.constant 0 : i32
    %c0_i32_1 = arith.constant 0 : i32
    %c0_i32_2 = arith.constant 0 : i32
    return %c0_i32, %c0_i32_0, %c0_i32_1 : i32, i32, i32
  }
  func.func @transform_8(%arg0: i32) -> (i32, i32) {
    %c0_i32 = arith.constant 0 : i32
    %c0_i32_0 = arith.constant 0 : i32
    %c0_i32_1 = arith.constant 0 : i32
    return %c0_i32, %c0_i32_0 : i32, i32
  }
  func.func @transform_9(%arg0: i32) -> (i32, i32, i32) {
    %c0_i32 = arith.constant 0 : i32
    %c0_i32_0 = arith.constant 0 : i32
    %c0_i32_1 = arith.constant 0 : i32
    %c0_i32_2 = arith.constant 0 : i32
    return %c0_i32, %c0_i32_0, %c0_i32_1 : i32, i32, i32
  }
  func.func @transform_10(%arg0: i32) -> (i32, i32) {
    %c0_i32 = arith.constant 0 : i32
    %c0_i32_0 = arith.constant 0 : i32
    %c0_i32_1 = arith.constant 0 : i32
    return %c0_i32, %c0_i32_0 : i32, i32
  }
  func.func @transform_11(%arg0: i32) -> (i32, i32, i32) {
    %c0_i32 = arith.constant 0 : i32
    %c0_i32_0 = arith.constant 0 : i32
    %c0_i32_1 = arith.constant 0 : i32
    return %arg0, %c0_i32, %c0_i32_0 : i32, i32, i32
  }
}

</mosaic_0001>

<llo_original>
// kernel: tpu_custom_call.1
$region0: #{tpu_custom_call.1}
  #allocation0 [shape = 'u32[]', space=smem, size = 0x4, offset = 0x4, fixed_abs, tag = 'smem constant byte address 0x4 - core index']
  #allocation1 [shape = 'u32[144,128]{1,0:T(1,128)}', space=vmem, size = 0x12000, scoped, tag = 'internal scratch']
  %s0 = inlined_call_operand.hbm [shape: f32[2,4,16], index: 0, kind: input, shape index: {}]
  %s1 = inlined_call_operand.hbm [shape: bf16[6,4,8], index: 1, kind: input, shape index: {}]
  %s2 = inlined_call_operand.vmem [shape: f32[1,8], index: 2, kind: input, shape index: {}]
  %s3 = inlined_call_operand.hbm [shape: bf16[6,8,8], index: 3, kind: input, shape index: {}]
  %s4 = inlined_call_operand.vmem [shape: f32[1,8], index: 4, kind: input, shape index: {}]
  %s5 = inlined_call_operand.vmem [shape: bf16[4,8], index: 5, kind: input, shape index: {}]
  %s6 = inlined_call_operand.vmem [shape: f32[1,8], index: 6, kind: input, shape index: {}]
  %s7 = inlined_call_operand.hbm [shape: bf16[6,8,8], index: 7, kind: input, shape index: {}]
  %s8 = inlined_call_operand.vmem [shape: f32[1,8], index: 8, kind: input, shape index: {}]
  %s9 = inlined_call_operand.hbm [shape: bf16[6,8,8], index: 9, kind: input, shape index: {}]
  %s10 = inlined_call_operand.vmem [shape: f32[1,8], index: 10, kind: input, shape index: {}]
  %s11 = inlined_call_operand.hbm [shape: f32[2,8,16], index: 11, kind: output, shape index: {}]
  %s12 = sld [smem:[#allocation0]]
  $region74: #{tpu_custom_call.1} parent=0
    _
  %s14 = ssub.s32 1, %s12
  %s15 = scalar_select 0, %s14, %s12
  $region1: #{tpu_custom_call.1} parent=0
    #allocation2 [shape = 'u8[4096]{0}', space=vmem, size = 0x1000, scoped, tag = 'input window, operand 0, single buffered']
    #allocation3 [shape = 's32[1]{0}', space=sflag, size = 0x4, scoped, tag = 'scoped memory for tpu_custom_call.1']
    #allocation4 [shape = 's32[1]{0}', space=sflag, size = 0x4, scoped, tag = 'scoped memory for tpu_custom_call.1']
    #allocation5 [shape = 'u8[6144]{0}', space=vmem, size = 0x1800, scoped, tag = 'input window, operand 1, single buffered']
    #allocation6 [shape = 's32[1]{0}', space=sflag, size = 0x4, scoped, tag = 'scoped memory for tpu_custom_call.1']
    #allocation7 [shape = 'u8[12288]{0}', space=vmem, size = 0x3000, scoped, tag = 'input window, operand 3, single buffered']
    #allocation8 [shape = 'u8[12288]{0}', space=vmem, size = 0x3000, scoped, tag = 'input window, operand 7, single buffered']
    #allocation9 [shape = 's32[1]{0}', space=sflag, size = 0x4, scoped, tag = 'scoped memory for tpu_custom_call.1']
    #allocation10 [shape = 'u8[12288]{0}', space=vmem, size = 0x3000, scoped, tag = 'input window, operand 9, single buffered']
    #allocation11 [shape = 'u8[8192]{0}', space=vmem, size = 0x2000, scoped, tag = 'output window, operand 0, single buffered']
    %16 = vsyncpa [#allocation3], 0
    %17 = vsyncpa [#allocation6], 0
    %18 = vsyncpa [#allocation9], 0
    %19 = vsyncpa [#allocation4], 0
    // Predicated region
    $region2: #{tpu_custom_call.1} parent=1 // pred_check
      _
    $region3: #{tpu_custom_call.1} parent=1 // pred_check_branch
      %21 = sbr.rel (0) target = $region5
    $region4: #{tpu_custom_call.1} parent=1 // pred_region
      %s23 = ssub.s32 128, 128
      %24 = vsyncadd [#allocation3], %s23
      %s25 = sshll.u32 [#allocation2], 4
      %s26 = int_to_ptr.vmem [resolvable:$true] %s25
      %31 = dma.hbm_to_vmem [thread:$0]  %s0, 128, %s26, [#allocation3], 64, 64, 4
    $region5: #{tpu_custom_call.1} parent=1 // pred_fallthru
      _
    // Predicated region
    $region6: #{tpu_custom_call.1} parent=1 // pred_check
      _
    $region7: #{tpu_custom_call.1} parent=1 // pred_check_branch
      %33 = sbr.rel (0) target = $region9
    $region8: #{tpu_custom_call.1} parent=1 // pred_region
      %s35 = ssub.s32 192, 192
      %36 = vsyncadd [#allocation6], %s35
      %s37 = sshll.u32 [#allocation5], 4
      %s38 = int_to_ptr.vmem [resolvable:$true] %s37
      %43 = dma.hbm_to_vmem [thread:$0]  %s1, 192, %s38, [#allocation6], 32, 32, 2
    $region9: #{tpu_custom_call.1} parent=1 // pred_fallthru
      _
    // Predicated region
    $region10: #{tpu_custom_call.1} parent=1 // pred_check
      _
    $region11: #{tpu_custom_call.1} parent=1 // pred_check_branch
      %45 = sbr.rel (0) target = $region13
    $region12: #{tpu_custom_call.1} parent=1 // pred_region
      _
    $region13: #{tpu_custom_call.1} parent=1 // pred_fallthru
      _
    // Predicated region
    $region14: #{tpu_custom_call.1} parent=1 // pred_check
      _
    $region15: #{tpu_custom_call.1} parent=1 // pred_check_branch
      %47 = sbr.rel (0) target = $region17
    $region16: #{tpu_custom_call.1} parent=1 // pred_region
      %s49 = ssub.s32 384, 384
      %50 = vsyncadd [#allocation6], %s49
      %s51 = sshll.u32 [#allocation7], 4
      %s52 = int_to_ptr.vmem [resolvable:$true] %s51
      %57 = dma.hbm_to_vmem [thread:$0]  %s3, 384, %s52, [#allocation6], 64, 64, 4
    $region17: #{tpu_custom_call.1} parent=1 // pred_fallthru
      _
    // Predicated region
    $region18: #{tpu_custom_call.1} parent=1 // pred_check
      _
    $region19: #{tpu_custom_call.1} parent=1 // pred_check_branch
      %59 = sbr.rel (0) target = $region21
    $region20: #{tpu_custom_call.1} parent=1 // pred_region
      _
    $region21: #{tpu_custom_call.1} parent=1 // pred_fallthru
      _
    // Predicated region
    $region22: #{tpu_custom_call.1} parent=1 // pred_check
      _
    $region23: #{tpu_custom_call.1} parent=1 // pred_check_branch
      %61 = sbr.rel (0) target = $region25
    $region24: #{tpu_custom_call.1} parent=1 // pred_region
      _
    $region25: #{tpu_custom_call.1} parent=1 // pred_fallthru
      _
    // Predicated region
    $region26: #{tpu_custom_call.1} parent=1 // pred_check
      _
    $region27: #{tpu_custom_call.1} parent=1 // pred_check_branch
      %63 = sbr.rel (0) target = $region29
    $region28: #{tpu_custom_call.1} parent=1 // pred_region
      _
    $region29: #{tpu_custom_call.1} parent=1 // pred_fallthru
      _
    // Predicated region
    $region30: #{tpu_custom_call.1} parent=1 // pred_check
      _
    $region31: #{tpu_custom_call.1} parent=1 // pred_check_branch
      %65 = sbr.rel (0) target = $region33
    $region32: #{tpu_custom_call.1} parent=1 // pred_region
      %s67 = ssub.s32 384, 384
      %68 = vsyncadd [#allocation9], %s67
      %s69 = sshll.u32 [#allocation8], 4
      %s70 = int_to_ptr.vmem [resolvable:$true] %s69
      %75 = dma.hbm_to_vmem [thread:$0]  %s7, 384, %s70, [#allocation9], 64, 64, 4
    $region33: #{tpu_custom_call.1} parent=1 // pred_fallthru
      _
    // Predicated region
    $region34: #{tpu_custom_call.1} parent=1 // pred_check
      _
    $region35: #{tpu_custom_call.1} parent=1 // pred_check_branch
      %77 = sbr.rel (0) target = $region37
    $region36: #{tpu_custom_call.1} parent=1 // pred_region
      _
    $region37: #{tpu_custom_call.1} parent=1 // pred_fallthru
      _
    // Predicated region
    $region38: #{tpu_custom_call.1} parent=1 // pred_check
      _
    $region39: #{tpu_custom_call.1} parent=1 // pred_check_branch
      %79 = sbr.rel (0) target = $region41
    $region40: #{tpu_custom_call.1} parent=1 // pred_region
      %s81 = ssub.s32 384, 384
      %82 = vsyncadd [#allocation9], %s81
      %s83 = sshll.u32 [#allocation10], 4
      %s84 = int_to_ptr.vmem [resolvable:$true] %s83
      %89 = dma.hbm_to_vmem [thread:$0]  %s9, 384, %s84, [#allocation9], 64, 64, 4
    $region41: #{tpu_custom_call.1} parent=1 // pred_fallthru
      _
    // Predicated region
    $region42: #{tpu_custom_call.1} parent=1 // pred_check
      _
    $region43: #{tpu_custom_call.1} parent=1 // pred_check_branch
      %91 = sbr.rel (0) target = $region45
    $region44: #{tpu_custom_call.1} parent=1 // pred_region
      _
    $region45: #{tpu_custom_call.1} parent=1 // pred_fallthru
      _
    // Predicated region
    $region46: #{tpu_custom_call.1} parent=1 // pred_check
      _
    $region47: #{tpu_custom_call.1} parent=1 // pred_check_branch
      %93 = sbr.rel (0) target = $region49
    $region48: #{tpu_custom_call.1} parent=1 // pred_region
      %94 = dma.done [#allocation3], 128
    $region49: #{tpu_custom_call.1} parent=1 // pred_fallthru
      _
    // Predicated region
    $region50: #{tpu_custom_call.1} parent=1 // pred_check
      _
    $region51: #{tpu_custom_call.1} parent=1 // pred_check_branch
      %96 = sbr.rel (0) target = $region53
    $region52: #{tpu_custom_call.1} parent=1 // pred_region
      %97 = dma.done [#allocation6], 192
    $region53: #{tpu_custom_call.1} parent=1 // pred_fallthru
      _
    // Predicated region
    $region54: #{tpu_custom_call.1} parent=1 // pred_check
      _
    $region55: #{tpu_custom_call.1} parent=1 // pred_check_branch
      %99 = sbr.rel (0) target = $region57
    $region56: #{tpu_custom_call.1} parent=1 // pred_region
      %100 = dma.done [#allocation6], 384
    $region57: #{tpu_custom_call.1} parent=1 // pred_fallthru
      _
    // Predicated region
    $region58: #{tpu_custom_call.1} parent=1 // pred_check
      _
    $region59: #{tpu_custom_call.1} parent=1 // pred_check_branch
      %102 = sbr.rel (0) target = $region61
    $region60: #{tpu_custom_call.1} parent=1 // pred_region
      %103 = dma.done [#allocation9], 384
    $region61: #{tpu_custom_call.1} parent=1 // pred_fallthru
      _
    // Predicated region
    $region62: #{tpu_custom_call.1} parent=1 // pred_check
      _
    $region63: #{tpu_custom_call.1} parent=1 // pred_check_branch
      %105 = sbr.rel (0) target = $region65
    $region64: #{tpu_custom_call.1} parent=1 // pred_region
      %106 = dma.done [#allocation9], 384
    $region65: #{tpu_custom_call.1} parent=1 // pred_fallthru
      _
    %v108 = vld [vmem:[#allocation2] sm:$0xf]
    %v109 = vld [vmem:[#allocation2 + $0x4] sm:$0xf]
    %110 = vxpose.xlu0.b32.start [1/16] %v108, 128
    %111 = vxpose.xlu0.b32.cont [2/16] 0.0, 128
    %112 = vxpose.xlu0.b32.cont [3/16] 0.0, 128
    %113 = vxpose.xlu0.b32.cont [4/16] 0.0, 128
    %114 = vxpose.xlu0.b32.cont [5/16] 0.0, 128
    %115 = vxpose.xlu0.b32.cont [6/16] 0.0, 128
    %116 = vxpose.xlu0.b32.cont [7/16] 0.0, 128
    %117 = vxpose.xlu0.b32.cont [8/16] 0.0, 128
    %118 = vxpose.xlu0.b32.cont [9/16] 0.0, 128
    %119 = vxpose.xlu0.b32.cont [10/16] 0.0, 128
    %120 = vxpose.xlu0.b32.cont [11/16] 0.0, 128
    %121 = vxpose.xlu0.b32.cont [12/16] 0.0, 128
    %122 = vxpose.xlu0.b32.cont [13/16] 0.0, 128
    %123 = vxpose.xlu0.b32.cont [14/16] 0.0, 128
    %124 = vxpose.xlu0.b32.cont [15/16] 0.0, 128
    %125 = vxpose.xlu0.b32.end [16/16] 0.0, 128
    %v126 = vpop.trf.xlu0
    %v127 = vpop.trf.xlu0
    %v128 = vpop.trf.xlu0
    %v129 = vpop.trf.xlu0
    %v130 = vpop.trf.xlu0
    %v131 = vpop.trf.xlu0
    %v132 = vpop.trf.xlu0
    %v133 = vpop.trf.xlu0
    %v134 = vpop.trf.xlu0
    %v135 = vpop.trf.xlu0
    %v136 = vpop.trf.xlu0
    %v137 = vpop.trf.xlu0
    %v138 = vpop.trf.xlu0
    %v139 = vpop.trf.xlu0
    %v140 = vpop.trf.xlu0
    %v141 = vpop.trf.xlu0
    %142 = vxpose.xlu0.b32.start [1/16] %v109, 128
    %143 = vxpose.xlu0.b32.cont [2/16] 0.0, 128
    %144 = vxpose.xlu0.b32.cont [3/16] 0.0, 128
    %145 = vxpose.xlu0.b32.cont [4/16] 0.0, 128
    %146 = vxpose.xlu0.b32.cont [5/16] 0.0, 128
    %147 = vxpose.xlu0.b32.cont [6/16] 0.0, 128
    %148 = vxpose.xlu0.b32.cont [7/16] 0.0, 128
    %149 = vxpose.xlu0.b32.cont [8/16] 0.0, 128
    %150 = vxpose.xlu0.b32.cont [9/16] 0.0, 128
    %151 = vxpose.xlu0.b32.cont [10/16] 0.0, 128
    %152 = vxpose.xlu0.b32.cont [11/16] 0.0, 128
    %153 = vxpose.xlu0.b32.cont [12/16] 0.0, 128
    %154 = vxpose.xlu0.b32.cont [13/16] 0.0, 128
    %155 = vxpose.xlu0.b32.cont [14/16] 0.0, 128
    %156 = vxpose.xlu0.b32.cont [15/16] 0.0, 128
    %157 = vxpose.xlu0.b32.end [16/16] 0.0, 128
    %v158 = vpop.trf.xlu0
    %v159 = vpop.trf.xlu0
    %v160 = vpop.trf.xlu0
    %v161 = vpop.trf.xlu0
    %v162 = vpop.trf.xlu0
    %v163 = vpop.trf.xlu0
    %v164 = vpop.trf.xlu0
    %v165 = vpop.trf.xlu0
    %v166 = vpop.trf.xlu0
    %v167 = vpop.trf.xlu0
    %v168 = vpop.trf.xlu0
    %v169 = vpop.trf.xlu0
    %v170 = vpop.trf.xlu0
    %v171 = vpop.trf.xlu0
    %v172 = vpop.trf.xlu0
    %v173 = vpop.trf.xlu0
    %v174 = vlaneseq
    %v175 = vshrl.u32 %v174, 7
    %v176 = vadd.s32 %v175, 8
    %v177 = vadd.s32 %v175, 16
    %v178 = vadd.s32 %v175, 24
    %vm179 = vcmp.lt.s32.totalorder %v175, 0
    %v180 = vsub.s32 0, %v175
    %v181 = vsel %vm179, %v180, %v175
    %v182 = vshrl.u32 %v181, 4
    %v183 = vand.u32 %v181, 15
    %v184 = vsub.s32 0, %v183
    %v185 = vsel %vm179, %v184, %v183
    %vm186 = vcmp.lt.s32.totalorder %v176, 0
    %v187 = vsub.s32 0, %v176
    %v188 = vsel %vm186, %v187, %v176
    %v189 = vshrl.u32 %v188, 4
    %v190 = vand.u32 %v188, 15
    %v191 = vsub.s32 0, %v190
    %v192 = vsel %vm186, %v191, %v190
    %vm193 = vcmp.lt.s32.totalorder %v177, 0
    %v194 = vsub.s32 0, %v177
    %v195 = vsel %vm193, %v194, %v177
    %v196 = vshrl.u32 %v195, 4
    %v197 = vand.u32 %v195, 15
    %v198 = vsub.s32 0, %v197
    %v199 = vsel %vm193, %v198, %v197
    %vm200 = vcmp.lt.s32.totalorder %v178, 0
    %v201 = vsub.s32 0, %v178
    %v202 = vsel %vm200, %v201, %v178
    %v203 = vshrl.u32 %v202, 4
    %v204 = vand.u32 %v202, 15
    %v205 = vsub.s32 0, %v204
    %v206 = vsel %vm200, %v205, %v204
    %vm207 = vcmp.ne.s32.totalorder %v185, 0
    %vm208 = vcmp.ne.s32.totalorder %v192, 0
    %vm209 = vcmp.ne.s32.totalorder %v199, 0
    %vm210 = vcmp.ne.s32.totalorder %v206, 0
    %vm211 = vcmp.lt.s32.totalorder %v185, 0
    %vm212 = vcmp.lt.s32.totalorder %v192, 0
    %vm213 = vcmp.lt.s32.totalorder %v199, 0
    %vm214 = vcmp.lt.s32.totalorder %v206, 0
    %vm215 = vmand %vm211, %vm207
    %vm216 = vmand %vm212, %vm208
    %vm217 = vmand %vm213, %vm209
    %vm218 = vmand %vm214, %vm210
    %v219 = vadd.s32 %v185, 16
    %v220 = vadd.s32 %v192, 16
    %v221 = vadd.s32 %v199, 16
    %v222 = vadd.s32 %v206, 16
    %v223 = vsel %vm215, %v219, %v185
    %v224 = vsel %vm216, %v220, %v192
    %v225 = vsel %vm217, %v221, %v199
    %v226 = vsel %vm218, %v222, %v206
    %v227 = vld [vmem:[#allocation5] sm:$0x3]
    %v228 = vld [vmem:[#allocation5 + $0x2] sm:$0x3]
    %v229 = vld [vmem:[#allocation5 + $0x4] sm:$0x3]
    %v230 = vld [vmem:[#allocation5 + $0x6] sm:$0x3]
    %v231 = vld [vmem:[#allocation5 + $0x8] sm:$0x3]
    %v232 = vld [vmem:[#allocation5 + $0xa] sm:$0x3]
    %v233 = vpack.c.bf16 %v127, %v126
    %v234 = vpack.c.bf16 %v159, %v158
    %vm235 = vcmp.ge.s32.totalorder %v223, 5
    %vm236 = vcmp.ge.s32.totalorder %v224, 5
    %vm237 = vcmp.ge.s32.totalorder %v225, 5
    %vm238 = vcmp.ge.s32.totalorder %v226, 5
    %v239 = vrot.slane %v126, 3
    %v240 = vrot.slane %v127, 3
    %v241 = vrot.slane %v158, 3
    %v242 = vrot.slane %v159, 3
    %vm243 = vcmp.lt.s32.totalorder %v175, 5
    %v244 = vsel %vm243, %v241, %v242
    %v245 = vsel %vm243, %v240, %v241
    %v246 = vsel %vm243, %v239, %v240
    %v247 = vsel %vm243, %v242, %v239
    %v248 = vsel %vm235, 1, 0
    %v249 = vsel %vm236, 1, 0
    %v250 = vsel %vm237, 1, 0
    %v251 = vsel %vm238, 1, 0
    %vm252 = vcmp.eq.s32.totalorder %v248, 1
    %vm253 = vcmp.eq.s32.totalorder %v249, 1
    %vm254 = vcmp.eq.s32.totalorder %v250, 1
    %vm255 = vcmp.eq.s32.totalorder %v251, 1
    %v256 = vsel %vm252, %v247, 0.0
    %v257 = vsel %vm253, %v246, 0.0
    %v258 = vsel %vm254, %v245, 0.0
    %v259 = vsel %vm255, %v244, 0.0
    %v260 = vpack.c.bf16 %v257, %v256
    %v261 = vpack.c.bf16 %v259, %v258
    %vm262 = vcmask 31744
    %v264 = vsel %vm262, %v260, 0
    %v267 = vsel %vm262, %v261, 0
    %vm269 = vcmask 1041408
    %v271 = vsel %vm269, %v227, 0
    %273 = vmatprep.subr.bf16.mxu0 0
    %274 = vmatpush1.bf16.msra.mxu0 0
    %275 = vmatprep.subr.bf16.mxu0 0
    %276 = vmatpush1.bf16.msra.mxu0 0
    %277 = vmatprep.subr.bf16.mxu0 0
    %278 = vmatpush1.bf16.msra.mxu0 0
    %279 = vmatprep.subr.bf16.mxu0 0
    %280 = vmatpush1.bf16.msra.mxu0 0
    %281 = vmatprep.subr.bf16.mxu0 0
    %282 = vmatpush1.bf16.msra.mxu0 0
    %283 = vmatprep.subr.bf16.mxu0 0
    %284 = vmatpush1.bf16.msra.mxu0 0
    %285 = vmatprep.subr.bf16.mxu0 0
    %286 = vmatpush1.bf16.msra.mxu0 0
    %287 = vmatprep.subr.bf16.mxu0 0
    %288 = vmatpush1.bf16.msra.mxu0 %v271
    %289 = vmatprep.subr.bf16.mxu0 0
    %290 = vmatpush2.bf16.msra.mxu0 0
    %291 = vmatprep.subr.bf16.mxu0 0
    %292 = vmatpush2.bf16.msra.mxu0 0
    %293 = vmatprep.subr.bf16.mxu0 0
    %294 = vmatpush2.bf16.msra.mxu0 0
    %295 = vmatprep.subr.bf16.mxu0 0
    %296 = vmatpush2.bf16.msra.mxu0 0
    %297 = vmatprep.subr.bf16.mxu0 0
    %298 = vmatpush2.bf16.msra.mxu0 0
    %299 = vmatprep.subr.bf16.mxu0 0
    %300 = vmatpush2.bf16.msra.mxu0 0
    %301 = vmatprep.subr.bf16.mxu0 0
    %302 = vmatpush2.bf16.msra.mxu0 0
    %303 = vmatprep.subr.bf16.mxu0 0
    %304 = vmatpush2.bf16.msra.mxu0 0
    %305 = vmatprep.mubr.bf16.mxu0 0
    %306 = vmatmul.mubr.bf16.gmra.mxu0 %v264
    %v307 = vpop.f32.mrf.mxu0
    %v308 = vadd.f32 0.0, %v307
    %v309 = vpop.f32.mrf.mxu0
    %v310 = vpop.f32.mrf.mxu0
    %v311 = vadd.f32 0.0, %v310
    %v312 = vpop.f32.mrf.mxu0
    %313 = vmatprep.mubr.bf16.mxu0 0
    %314 = vmatmul.mubr.bf16.gmra.mxu0 %v267
    %v315 = vpop.f32.mrf.mxu0
    %v316 = vadd.f32 0.0, %v315
    %v317 = vpop.f32.mrf.mxu0
    %v318 = vpop.f32.mrf.mxu0
    %v319 = vadd.f32 0.0, %v318
    %v320 = vpop.f32.mrf.mxu0
    %321 = vdwg.mxu0
    %v323 = vsel %vm262, %v233, 0
    %v326 = vsel %vm262, %v234, 0
    %v329 = vsel %vm269, %v232, 0
    %331 = vmatprep.subr.bf16.mxu0 0
    %332 = vmatpush1.bf16.msra.mxu0 0
    %333 = vmatprep.subr.bf16.mxu0 0
    %334 = vmatpush1.bf16.msra.mxu0 0
    %335 = vmatprep.subr.bf16.mxu0 0
    %336 = vmatpush1.bf16.msra.mxu0 0
    %337 = vmatprep.subr.bf16.mxu0 0
    %338 = vmatpush1.bf16.msra.mxu0 0
    %339 = vmatprep.subr.bf16.mxu0 0
    %340 = vmatpush1.bf16.msra.mxu0 0
    %341 = vmatprep.subr.bf16.mxu0 0
    %342 = vmatpush1.bf16.msra.mxu0 0
    %343 = vmatprep.subr.bf16.mxu0 0
    %344 = vmatpush1.bf16.msra.mxu0 0
    %345 = vmatprep.subr.bf16.mxu0 0
    %346 = vmatpush1.bf16.msra.mxu0 %v329
    %347 = vmatprep.subr.bf16.mxu0 0
    %348 = vmatpush2.bf16.msra.mxu0 0
    %349 = vmatprep.subr.bf16.mxu0 0
    %350 = vmatpush2.bf16.msra.mxu0 0
    %351 = vmatprep.subr.bf16.mxu0 0
    %352 = vmatpush2.bf16.msra.mxu0 0
    %353 = vmatprep.subr.bf16.mxu0 0
    %354 = vmatpush2.bf16.msra.mxu0 0
    %355 = vmatprep.subr.bf16.mxu0 0
    %356 = vmatpush2.bf16.msra.mxu0 0
    %357 = vmatprep.subr.bf16.mxu0 0
    %358 = vmatpush2.bf16.msra.mxu0 0
    %359 = vmatprep.subr.bf16.mxu0 0
    %360 = vmatpush2.bf16.msra.mxu0 0
    %361 = vmatprep.subr.bf16.mxu0 0
    %362 = vmatpush2.bf16.msra.mxu0 0
    %363 = vmatprep.mubr.bf16.mxu0 0
    %364 = vmatmul.mubr.bf16.gmra.mxu0 %v323
    %v365 = vpop.f32.mrf.mxu0
    %v366 = vadd.f32 %v308, %v365
    %v367 = vpop.f32.mrf.mxu0
    %v368 = vpop.f32.mrf.mxu0
    %v369 = vadd.f32 %v311, %v368
    %v370 = vpop.f32.mrf.mxu0
    %371 = vmatprep.mubr.bf16.mxu0 0
    %372 = vmatmul.mubr.bf16.gmra.mxu0 %v326
    %v373 = vpop.f32.mrf.mxu0
    %v374 = vadd.f32 %v316, %v373
    %v375 = vpop.f32.mrf.mxu0
    %v376 = vpop.f32.mrf.mxu0
    %v377 = vadd.f32 %v319, %v376
    %v378 = vpop.f32.mrf.mxu0
    %379 = vdwg.mxu0
    %vm380 = vcmp.ge.s32.totalorder %v223, 4
    %vm381 = vcmp.ge.s32.totalorder %v224, 4
    %vm382 = vcmp.ge.s32.totalorder %v225, 4
    %vm383 = vcmp.ge.s32.totalorder %v226, 4
    %v384 = vrot.slane %v126, 4
    %v385 = vrot.slane %v127, 4
    %v386 = vrot.slane %v158, 4
    %v387 = vrot.slane %v159, 4
    %vm388 = vcmp.lt.s32.totalorder %v175, 4
    %v389 = vsel %vm388, %v386, %v387
    %v390 = vsel %vm388, %v385, %v386
    %v391 = vsel %vm388, %v384, %v385
    %v392 = vsel %vm388, %v387, %v384
    %v393 = vsel %vm380, 1, 0
    %v394 = vsel %vm381, 1, 0
    %v395 = vsel %vm382, 1, 0
    %v396 = vsel %vm383, 1, 0
    %vm397 = vcmp.eq.s32.totalorder %v393, 1
    %vm398 = vcmp.eq.s32.totalorder %v394, 1
    %vm399 = vcmp.eq.s32.totalorder %v395, 1
    %vm400 = vcmp.eq.s32.totalorder %v396, 1
    %v401 = vsel %vm397, %v392, 0.0
    %v402 = vsel %vm398, %v391, 0.0
    %v403 = vsel %vm399, %v390, 0.0
    %v404 = vsel %vm400, %v389, 0.0
    %v405 = vpack.c.bf16 %v402, %v401
    %v406 = vpack.c.bf16 %v404, %v403
    %v408 = vsel %vm262, %v405, 0
    %v411 = vsel %vm262, %v406, 0
    %v414 = vsel %vm269, %v228, 0
    %416 = vmatprep.subr.bf16.mxu0 0
    %417 = vmatpush1.bf16.msra.mxu0 0
    %418 = vmatprep.subr.bf16.mxu0 0
    %419 = vmatpush1.bf16.msra.mxu0 0
    %420 = vmatprep.subr.bf16.mxu0 0
    %421 = vmatpush1.bf16.msra.mxu0 0
    %422 = vmatprep.subr.bf16.mxu0 0
    %423 = vmatpush1.bf16.msra.mxu0 0
    %424 = vmatprep.subr.bf16.mxu0 0
    %425 = vmatpush1.bf16.msra.mxu0 0
    %426 = vmatprep.subr.bf16.mxu0 0
    %427 = vmatpush1.bf16.msra.mxu0 0
    %428 = vmatprep.subr.bf16.mxu0 0
    %429 = vmatpush1.bf16.msra.mxu0 0
    %430 = vmatprep.subr.bf16.mxu0 0
    %431 = vmatpush1.bf16.msra.mxu0 %v414
    %432 = vmatprep.subr.bf16.mxu0 0
    %433 = vmatpush2.bf16.msra.mxu0 0
    %434 = vmatprep.subr.bf16.mxu0 0
    %435 = vmatpush2.bf16.msra.mxu0 0
    %436 = vmatprep.subr.bf16.mxu0 0
    %437 = vmatpush2.bf16.msra.mxu0 0
    %438 = vmatprep.subr.bf16.mxu0 0
    %439 = vmatpush2.bf16.msra.mxu0 0
    %440 = vmatprep.subr.bf16.mxu0 0
    %441 = vmatpush2.bf16.msra.mxu0 0
    %442 = vmatprep.subr.bf16.mxu0 0
    %443 = vmatpush2.bf16.msra.mxu0 0
    %444 = vmatprep.subr.bf16.mxu0 0
    %445 = vmatpush2.bf16.msra.mxu0 0
    %446 = vmatprep.subr.bf16.mxu0 0
    %447 = vmatpush2.bf16.msra.mxu0 0
    %448 = vmatprep.mubr.bf16.mxu0 0
    %449 = vmatmul.mubr.bf16.gmra.mxu0 %v408
    %v450 = vpop.f32.mrf.mxu0
    %v451 = vadd.f32 0.0, %v450
    %v452 = vpop.f32.mrf.mxu0
    %v453 = vpop.f32.mrf.mxu0
    %v454 = vadd.f32 0.0, %v453
    %v455 = vpop.f32.mrf.mxu0
    %456 = vmatprep.mubr.bf16.mxu0 0
    %457 = vmatmul.mubr.bf16.gmra.mxu0 %v411
    %v458 = vpop.f32.mrf.mxu0
    %v459 = vadd.f32 0.0, %v458
    %v460 = vpop.f32.mrf.mxu0
    %v461 = vpop.f32.mrf.mxu0
    %v462 = vadd.f32 0.0, %v461
    %v463 = vpop.f32.mrf.mxu0
    %464 = vdwg.mxu0
    %v465 = vadd.f32 %v366, %v451
    %v466 = vadd.f32 %v369, %v454
    %v467 = vadd.f32 %v374, %v459
    %v468 = vadd.f32 %v377, %v462
    %vm469 = vcmp.ge.s32.totalorder %v223, 3
    %vm470 = vcmp.ge.s32.totalorder %v224, 3
    %vm471 = vcmp.ge.s32.totalorder %v225, 3
    %vm472 = vcmp.ge.s32.totalorder %v226, 3
    %v473 = vrot.slane %v126, 5
    %v474 = vrot.slane %v127, 5
    %v475 = vrot.slane %v158, 5
    %v476 = vrot.slane %v159, 5
    %vm477 = vcmp.lt.s32.totalorder %v175, 3
    %v478 = vsel %vm477, %v475, %v476
    %v479 = vsel %vm477, %v474, %v475
    %v480 = vsel %vm477, %v473, %v474
    %v481 = vsel %vm477, %v476, %v473
    %v482 = vsel %vm469, 1, 0
    %v483 = vsel %vm470, 1, 0
    %v484 = vsel %vm471, 1, 0
    %v485 = vsel %vm472, 1, 0
    %vm486 = vcmp.eq.s32.totalorder %v482, 1
    %vm487 = vcmp.eq.s32.totalorder %v483, 1
    %vm488 = vcmp.eq.s32.totalorder %v484, 1
    %vm489 = vcmp.eq.s32.totalorder %v485, 1
    %v490 = vsel %vm486, %v481, 0.0
    %v491 = vsel %vm487, %v480, 0.0
    %v492 = vsel %vm488, %v479, 0.0
    %v493 = vsel %vm489, %v478, 0.0
    %v494 = vpack.c.bf16 %v491, %v490
    %v495 = vpack.c.bf16 %v493, %v492
    %v497 = vsel %vm262, %v494, 0
    %v500 = vsel %vm262, %v495, 0
    %v503 = vsel %vm269, %v229, 0
    %505 = vmatprep.subr.bf16.mxu0 0
    %506 = vmatpush1.bf16.msra.mxu0 0
    %507 = vmatprep.subr.bf16.mxu0 0
    %508 = vmatpush1.bf16.msra.mxu0 0
    %509 = vmatprep.subr.bf16.mxu0 0
    %510 = vmatpush1.bf16.msra.mxu0 0
    %511 = vmatprep.subr.bf16.mxu0 0
    %512 = vmatpush1.bf16.msra.mxu0 0
    %513 = vmatprep.subr.bf16.mxu0 0
    %514 = vmatpush1.bf16.msra.mxu0 0
    %515 = vmatprep.subr.bf16.mxu0 0
    %516 = vmatpush1.bf16.msra.mxu0 0
    %517 = vmatprep.subr.bf16.mxu0 0
    %518 = vmatpush1.bf16.msra.mxu0 0
    %519 = vmatprep.subr.bf16.mxu0 0
    %520 = vmatpush1.bf16.msra.mxu0 %v503
    %521 = vmatprep.subr.bf16.mxu0 0
    %522 = vmatpush2.bf16.msra.mxu0 0
    %523 = vmatprep.subr.bf16.mxu0 0
    %524 = vmatpush2.bf16.msra.mxu0 0
    %525 = vmatprep.subr.bf16.mxu0 0
    %526 = vmatpush2.bf16.msra.mxu0 0
    %527 = vmatprep.subr.bf16.mxu0 0
    %528 = vmatpush2.bf16.msra.mxu0 0
    %529 = vmatprep.subr.bf16.mxu0 0
    %530 = vmatpush2.bf16.msra.mxu0 0
    %531 = vmatprep.subr.bf16.mxu0 0
    %532 = vmatpush2.bf16.msra.mxu0 0
    %533 = vmatprep.subr.bf16.mxu0 0
    %534 = vmatpush2.bf16.msra.mxu0 0
    %535 = vmatprep.subr.bf16.mxu0 0
    %536 = vmatpush2.bf16.msra.mxu0 0
    %537 = vmatprep.mubr.bf16.mxu0 0
    %538 = vmatmul.mubr.bf16.gmra.mxu0 %v497
    %v539 = vpop.f32.mrf.mxu0
    %v540 = vadd.f32 0.0, %v539
    %v541 = vpop.f32.mrf.mxu0
    %v542 = vpop.f32.mrf.mxu0
    %v543 = vadd.f32 0.0, %v542
    %v544 = vpop.f32.mrf.mxu0
    %545 = vmatprep.mubr.bf16.mxu0 0
    %546 = vmatmul.mubr.bf16.gmra.mxu0 %v500
    %v547 = vpop.f32.mrf.mxu0
    %v548 = vadd.f32 0.0, %v547
    %v549 = vpop.f32.mrf.mxu0
    %v550 = vpop.f32.mrf.mxu0
    %v551 = vadd.f32 0.0, %v550
    %v552 = vpop.f32.mrf.mxu0
    %553 = vdwg.mxu0
    %v554 = vadd.f32 %v465, %v540
    %v555 = vadd.f32 %v466, %v543
    %v556 = vadd.f32 %v467, %v548
    %v557 = vadd.f32 %v468, %v551
    %vm558 = vcmp.ge.s32.totalorder %v223, 2
    %vm559 = vcmp.ge.s32.totalorder %v224, 2
    %vm560 = vcmp.ge.s32.totalorder %v225, 2
    %vm561 = vcmp.ge.s32.totalorder %v226, 2
    %v562 = vrot.slane %v126, 6
    %v563 = vrot.slane %v127, 6
    %v564 = vrot.slane %v158, 6
    %v565 = vrot.slane %v159, 6
    %vm566 = vcmp.lt.s32.totalorder %v175, 2
    %v567 = vsel %vm566, %v564, %v565
    %v568 = vsel %vm566, %v563, %v564
    %v569 = vsel %vm566, %v562, %v563
    %v570 = vsel %vm566, %v565, %v562
    %v571 = vsel %vm558, 1, 0
    %v572 = vsel %vm559, 1, 0
    %v573 = vsel %vm560, 1, 0
    %v574 = vsel %vm561, 1, 0
    %vm575 = vcmp.eq.s32.totalorder %v571, 1
    %vm576 = vcmp.eq.s32.totalorder %v572, 1
    %vm577 = vcmp.eq.s32.totalorder %v573, 1
    %vm578 = vcmp.eq.s32.totalorder %v574, 1
    %v579 = vsel %vm575, %v570, 0.0
    %v580 = vsel %vm576, %v569, 0.0
    %v581 = vsel %vm577, %v568, 0.0
    %v582 = vsel %vm578, %v567, 0.0
    %v583 = vpack.c.bf16 %v580, %v579
    %v584 = vpack.c.bf16 %v582, %v581
    %v586 = vsel %vm262, %v583, 0
    %v589 = vsel %vm262, %v584, 0
    %v592 = vsel %vm269, %v230, 0
    %594 = vmatprep.subr.bf16.mxu0 0
    %595 = vmatpush1.bf16.msra.mxu0 0
    %596 = vmatprep.subr.bf16.mxu0 0
    %597 = vmatpush1.bf16.msra.mxu0 0
    %598 = vmatprep.subr.bf16.mxu0 0
    %599 = vmatpush1.bf16.msra.mxu0 0
    %600 = vmatprep.subr.bf16.mxu0 0
    %601 = vmatpush1.bf16.msra.mxu0 0
    %602 = vmatprep.subr.bf16.mxu0 0
    %603 = vmatpush1.bf16.msra.mxu0 0
    %604 = vmatprep.subr.bf16.mxu0 0
    %605 = vmatpush1.bf16.msra.mxu0 0
    %606 = vmatprep.subr.bf16.mxu0 0
    %607 = vmatpush1.bf16.msra.mxu0 0
    %608 = vmatprep.subr.bf16.mxu0 0
    %609 = vmatpush1.bf16.msra.mxu0 %v592
    %610 = vmatprep.subr.bf16.mxu0 0
    %611 = vmatpush2.bf16.msra.mxu0 0
    %612 = vmatprep.subr.bf16.mxu0 0
    %613 = vmatpush2.bf16.msra.mxu0 0
    %614 = vmatprep.subr.bf16.mxu0 0
    %615 = vmatpush2.bf16.msra.mxu0 0
    %616 = vmatprep.subr.bf16.mxu0 0
    %617 = vmatpush2.bf16.msra.mxu0 0
    %618 = vmatprep.subr.bf16.mxu0 0
    %619 = vmatpush2.bf16.msra.mxu0 0
    %620 = vmatprep.subr.bf16.mxu0 0
    %621 = vmatpush2.bf16.msra.mxu0 0
    %622 = vmatprep.subr.bf16.mxu0 0
    %623 = vmatpush2.bf16.msra.mxu0 0
    %624 = vmatprep.subr.bf16.mxu0 0
    %625 = vmatpush2.bf16.msra.mxu0 0
    %626 = vmatprep.mubr.bf16.mxu0 0
    %627 = vmatmul.mubr.bf16.gmra.mxu0 %v586
    %v628 = vpop.f32.mrf.mxu0
    %v629 = vadd.f32 0.0, %v628
    %v630 = vpop.f32.mrf.mxu0
    %v631 = vpop.f32.mrf.mxu0
    %v632 = vadd.f32 0.0, %v631
    %v633 = vpop.f32.mrf.mxu0
    %634 = vmatprep.mubr.bf16.mxu0 0
    %635 = vmatmul.mubr.bf16.gmra.mxu0 %v589
    %v636 = vpop.f32.mrf.mxu0
    %v637 = vadd.f32 0.0, %v636
    %v638 = vpop.f32.mrf.mxu0
    %v639 = vpop.f32.mrf.mxu0
    %v640 = vadd.f32 0.0, %v639
    %v641 = vpop.f32.mrf.mxu0
    %642 = vdwg.mxu0
    %v643 = vadd.f32 %v554, %v629
    %v644 = vadd.f32 %v555, %v632
    %v645 = vadd.f32 %v556, %v637
    %v646 = vadd.f32 %v557, %v640
    %vm647 = vcmp.ge.s32.totalorder %v223, 1
    %vm648 = vcmp.ge.s32.totalorder %v224, 1
    %vm649 = vcmp.ge.s32.totalorder %v225, 1
    %vm650 = vcmp.ge.s32.totalorder %v226, 1
    %v651 = vrot.slane %v126, 7
    %v652 = vrot.slane %v127, 7
    %v653 = vrot.slane %v158, 7
    %v654 = vrot.slane %v159, 7
    %vm655 = vcmp.lt.s32.totalorder %v175, 1
    %v656 = vsel %vm655, %v653, %v654
    %v657 = vsel %vm655, %v652, %v653
    %v658 = vsel %vm655, %v651, %v652
    %v659 = vsel %vm655, %v654, %v651
    %v660 = vsel %vm647, 1, 0
    %v661 = vsel %vm648, 1, 0
    %v662 = vsel %vm649, 1, 0
    %v663 = vsel %vm650, 1, 0
    %vm664 = vcmp.eq.s32.totalorder %v660, 1
    %vm665 = vcmp.eq.s32.totalorder %v661, 1
    %vm666 = vcmp.eq.s32.totalorder %v662, 1
    %vm667 = vcmp.eq.s32.totalorder %v663, 1
    %v668 = vsel %vm664, %v659, 0.0
    %v669 = vsel %vm665, %v658, 0.0
    %v670 = vsel %vm666, %v657, 0.0
    %v671 = vsel %vm667, %v656, 0.0
    %v672 = vpack.c.bf16 %v669, %v668
    %v673 = vpack.c.bf16 %v671, %v670
    %v675 = vsel %vm262, %v672, 0
    %v678 = vsel %vm262, %v673, 0
    %v681 = vsel %vm269, %v231, 0
    %683 = vmatprep.subr.bf16.mxu0 0
    %684 = vmatpush1.bf16.msra.mxu0 0
    %685 = vmatprep.subr.bf16.mxu0 0
    %686 = vmatpush1.bf16.msra.mxu0 0
    %687 = vmatprep.subr.bf16.mxu0 0
    %688 = vmatpush1.bf16.msra.mxu0 0
    %689 = vmatprep.subr.bf16.mxu0 0
    %690 = vmatpush1.bf16.msra.mxu0 0
    %691 = vmatprep.subr.bf16.mxu0 0
    %692 = vmatpush1.bf16.msra.mxu0 0
    %693 = vmatprep.subr.bf16.mxu0 0
    %694 = vmatpush1.bf16.msra.mxu0 0
    %695 = vmatprep.subr.bf16.mxu0 0
    %696 = vmatpush1.bf16.msra.mxu0 0
    %697 = vmatprep.subr.bf16.mxu0 0
    %698 = vmatpush1.bf16.msra.mxu0 %v681
    %699 = vmatprep.subr.bf16.mxu0 0
    %700 = vmatpush2.bf16.msra.mxu0 0
    %701 = vmatprep.subr.bf16.mxu0 0
    %702 = vmatpush2.bf16.msra.mxu0 0
    %703 = vmatprep.subr.bf16.mxu0 0
    %704 = vmatpush2.bf16.msra.mxu0 0
    %705 = vmatprep.subr.bf16.mxu0 0
    %706 = vmatpush2.bf16.msra.mxu0 0
    %707 = vmatprep.subr.bf16.mxu0 0
    %708 = vmatpush2.bf16.msra.mxu0 0
    %709 = vmatprep.subr.bf16.mxu0 0
    %710 = vmatpush2.bf16.msra.mxu0 0
    %711 = vmatprep.subr.bf16.mxu0 0
    %712 = vmatpush2.bf16.msra.mxu0 0
    %713 = vmatprep.subr.bf16.mxu0 0
    %714 = vmatpush2.bf16.msra.mxu0 0
    %715 = vmatprep.mubr.bf16.mxu0 0
    %716 = vmatmul.mubr.bf16.gmra.mxu0 %v675
    %v717 = vpop.f32.mrf.mxu0
    %v718 = vadd.f32 0.0, %v717
    %v719 = vpop.f32.mrf.mxu0
    %v720 = vpop.f32.mrf.mxu0
    %v721 = vadd.f32 0.0, %v720
    %v722 = vpop.f32.mrf.mxu0
    %723 = vmatprep.mubr.bf16.mxu0 0
    %724 = vmatmul.mubr.bf16.gmra.mxu0 %v678
    %v725 = vpop.f32.mrf.mxu0
    %v726 = vadd.f32 0.0, %v725
    %v727 = vpop.f32.mrf.mxu0
    %v728 = vpop.f32.mrf.mxu0
    %v729 = vadd.f32 0.0, %v728
    %v730 = vpop.f32.mrf.mxu0
    %731 = vdwg.mxu0
    %v732 = vadd.f32 %v643, %v718
    %v733 = vadd.f32 %v644, %v721
    %v734 = vadd.f32 %v645, %v726
    %v735 = vadd.f32 %v646, %v729
    %v736 = vld [vmem:[%s2] sm:$0x1]
    %v738 = vlaneseq
    %v739 = vshrl.u32 %v738, 7
    %v740 = vsub.s32 0, %v739
    %v741 = vrot.slane %v736, %v740
    %v743 = vadd.f32 %v732, %v741
    %v744 = vadd.f32 %v733, %v741
    %v745 = vadd.f32 %v734, %v741
    %v746 = vadd.f32 %v735, %v741
    %vm747 = vcmp.gt.f32.partialorder %v743, 0.0
    %vm748 = vcmp.gt.f32.partialorder %v744, 0.0
    %vm749 = vcmp.gt.f32.partialorder %v745, 0.0
    %vm750 = vcmp.gt.f32.partialorder %v746, 0.0
    %v751 = vmul.f32 %v743, 0.01
    %v752 = vmul.f32 %v744, 0.01
    %v753 = vmul.f32 %v745, 0.01
    %v754 = vmul.f32 %v746, 0.01
    %v755 = vsel %vm747, %v743, %v751
    %v756 = vsel %vm748, %v744, %v752
    %v757 = vsel %vm749, %v745, %v753
    %v758 = vsel %vm750, %v746, %v754
    %v759 = vld [vmem:[#allocation7] sm:$0xf]
    %v760 = vld [vmem:[#allocation7 + $0x4] sm:$0xf]
    %v761 = vld [vmem:[#allocation7 + $0x8] sm:$0xf]
    %v762 = vld [vmem:[#allocation7 + $0xc] sm:$0xf]
    %v763 = vld [vmem:[#allocation7 + $0x10] sm:$0xf]
    %v764 = vld [vmem:[#allocation7 + $0x14] sm:$0xf]
    %v765 = vpack.c.bf16 %v756, %v755
    %v766 = vpack.c.bf16 %v758, %v757
    %v767 = vrot.slane %v755, 3
    %v768 = vrot.slane %v756, 3
    %v769 = vrot.slane %v757, 3
    %v770 = vrot.slane %v758, 3
    %v771 = vsel %vm243, %v769, %v770
    %v772 = vsel %vm243, %v768, %v769
    %v773 = vsel %vm243, %v767, %v768
    %v774 = vsel %vm243, %v770, %v767
    %v775 = vsel %vm252, %v774, 0.0
    %v776 = vsel %vm253, %v773, 0.0
    %v777 = vsel %vm254, %v772, 0.0
    %v778 = vsel %vm255, %v771, 0.0
    %v779 = vpack.c.bf16 %v776, %v775
    %v780 = vpack.c.bf16 %v778, %v777
    %vm781 = vcmask 64512
    %v783 = vsel %vm781, %v779, 0
    %v786 = vsel %vm781, %v780, 0
    %vm788 = vcmask 1043456
    %v790 = vsel %vm788, %v759, 0
    %792 = vmatprep.subr.bf16.mxu0 0
    %793 = vmatpush1.bf16.msra.mxu0 0
    %794 = vmatprep.subr.bf16.mxu0 0
    %795 = vmatpush1.bf16.msra.mxu0 0
    %796 = vmatprep.subr.bf16.mxu0 0
    %797 = vmatpush1.bf16.msra.mxu0 0
    %798 = vmatprep.subr.bf16.mxu0 0
    %799 = vmatpush1.bf16.msra.mxu0 0
    %800 = vmatprep.subr.bf16.mxu0 0
    %801 = vmatpush1.bf16.msra.mxu0 0
    %802 = vmatprep.subr.bf16.mxu0 0
    %803 = vmatpush1.bf16.msra.mxu0 0
    %804 = vmatprep.subr.bf16.mxu0 0
    %805 = vmatpush1.bf16.msra.mxu0 0
    %806 = vmatprep.subr.bf16.mxu0 0
    %807 = vmatpush1.bf16.msra.mxu0 %v790
    %808 = vmatprep.subr.bf16.mxu0 0
    %809 = vmatpush2.bf16.msra.mxu0 0
    %810 = vmatprep.subr.bf16.mxu0 0
    %811 = vmatpush2.bf16.msra.mxu0 0
    %812 = vmatprep.subr.bf16.mxu0 0
    %813 = vmatpush2.bf16.msra.mxu0 0
    %814 = vmatprep.subr.bf16.mxu0 0
    %815 = vmatpush2.bf16.msra.mxu0 0
    %816 = vmatprep.subr.bf16.mxu0 0
    %817 = vmatpush2.bf16.msra.mxu0 0
    %818 = vmatprep.subr.bf16.mxu0 0
    %819 = vmatpush2.bf16.msra.mxu0 0
    %820 = vmatprep.subr.bf16.mxu0 0
    %821 = vmatpush2.bf16.msra.mxu0 0
    %822 = vmatprep.subr.bf16.mxu0 0
    %823 = vmatpush2.bf16.msra.mxu0 0
    %824 = vmatprep.mubr.bf16.mxu0 0
    %825 = vmatmul.mubr.bf16.gmra.mxu0 %v783
    %v826 = vpop.f32.mrf.mxu0
    %v827 = vadd.f32 0.0, %v826
    %v828 = vpop.f32.mrf.mxu0
    %v829 = vpop.f32.mrf.mxu0
    %v830 = vadd.f32 0.0, %v829
    %v831 = vpop.f32.mrf.mxu0
    %832 = vmatprep.mubr.bf16.mxu0 0
    %833 = vmatmul.mubr.bf16.gmra.mxu0 %v786
    %v834 = vpop.f32.mrf.mxu0
    %v835 = vadd.f32 0.0, %v834
    %v836 = vpop.f32.mrf.mxu0
    %v837 = vpop.f32.mrf.mxu0
    %v838 = vadd.f32 0.0, %v837
    %v839 = vpop.f32.mrf.mxu0
    %840 = vdwg.mxu0
    %v842 = vsel %vm781, %v765, 0
    %v845 = vsel %vm781, %v766, 0
    %v848 = vsel %vm788, %v764, 0
    %850 = vmatprep.subr.bf16.mxu0 0
    %851 = vmatpush1.bf16.msra.mxu0 0
    %852 = vmatprep.subr.bf16.mxu0 0
    %853 = vmatpush1.bf16.msra.mxu0 0
    %854 = vmatprep.subr.bf16.mxu0 0
    %855 = vmatpush1.bf16.msra.mxu0 0
    %856 = vmatprep.subr.bf16.mxu0 0
    %857 = vmatpush1.bf16.msra.mxu0 0
    %858 = vmatprep.subr.bf16.mxu0 0
    %859 = vmatpush1.bf16.msra.mxu0 0
    %860 = vmatprep.subr.bf16.mxu0 0
    %861 = vmatpush1.bf16.msra.mxu0 0
    %862 = vmatprep.subr.bf16.mxu0 0
    %863 = vmatpush1.bf16.msra.mxu0 0
    %864 = vmatprep.subr.bf16.mxu0 0
    %865 = vmatpush1.bf16.msra.mxu0 %v848
    %866 = vmatprep.subr.bf16.mxu0 0
    %867 = vmatpush2.bf16.msra.mxu0 0
    %868 = vmatprep.subr.bf16.mxu0 0
    %869 = vmatpush2.bf16.msra.mxu0 0
    %870 = vmatprep.subr.bf16.mxu0 0
    %871 = vmatpush2.bf16.msra.mxu0 0
    %872 = vmatprep.subr.bf16.mxu0 0
    %873 = vmatpush2.bf16.msra.mxu0 0
    %874 = vmatprep.subr.bf16.mxu0 0
    %875 = vmatpush2.bf16.msra.mxu0 0
    %876 = vmatprep.subr.bf16.mxu0 0
    %877 = vmatpush2.bf16.msra.mxu0 0
    %878 = vmatprep.subr.bf16.mxu0 0
    %879 = vmatpush2.bf16.msra.mxu0 0
    %880 = vmatprep.subr.bf16.mxu0 0
    %881 = vmatpush2.bf16.msra.mxu0 0
    %882 = vmatprep.mubr.bf16.mxu0 0
    %883 = vmatmul.mubr.bf16.gmra.mxu0 %v842
    %v884 = vpop.f32.mrf.mxu0
    %v885 = vadd.f32 %v827, %v884
    %v886 = vpop.f32.mrf.mxu0
    %v887 = vpop.f32.mrf.mxu0
    %v888 = vadd.f32 %v830, %v887
    %v889 = vpop.f32.mrf.mxu0
    %890 = vmatprep.mubr.bf16.mxu0 0
    %891 = vmatmul.mubr.bf16.gmra.mxu0 %v845
    %v892 = vpop.f32.mrf.mxu0
    %v893 = vadd.f32 %v835, %v892
    %v894 = vpop.f32.mrf.mxu0
    %v895 = vpop.f32.mrf.mxu0
    %v896 = vadd.f32 %v838, %v895
    %v897 = vpop.f32.mrf.mxu0
    %898 = vdwg.mxu0
    %v899 = vrot.slane %v755, 4
    %v900 = vrot.slane %v756, 4
    %v901 = vrot.slane %v757, 4
    %v902 = vrot.slane %v758, 4
    %v903 = vsel %vm388, %v901, %v902
    %v904 = vsel %vm388, %v900, %v901
    %v905 = vsel %vm388, %v899, %v900
    %v906 = vsel %vm388, %v902, %v899
    %v907 = vsel %vm397, %v906, 0.0
    %v908 = vsel %vm398, %v905, 0.0
    %v909 = vsel %vm399, %v904, 0.0
    %v910 = vsel %vm400, %v903, 0.0
    %v911 = vpack.c.bf16 %v908, %v907
    %v912 = vpack.c.bf16 %v910, %v909
    %v914 = vsel %vm781, %v911, 0
    %v917 = vsel %vm781, %v912, 0
    %v920 = vsel %vm788, %v760, 0
    %922 = vmatprep.subr.bf16.mxu0 0
    %923 = vmatpush1.bf16.msra.mxu0 0
    %924 = vmatprep.subr.bf16.mxu0 0
    %925 = vmatpush1.bf16.msra.mxu0 0
    %926 = vmatprep.subr.bf16.mxu0 0
    %927 = vmatpush1.bf16.msra.mxu0 0
    %928 = vmatprep.subr.bf16.mxu0 0
    %929 = vmatpush1.bf16.msra.mxu0 0
    %930 = vmatprep.subr.bf16.mxu0 0
    %931 = vmatpush1.bf16.msra.mxu0 0
    %932 = vmatprep.subr.bf16.mxu0 0
    %933 = vmatpush1.bf16.msra.mxu0 0
    %934 = vmatprep.subr.bf16.mxu0 0
    %935 = vmatpush1.bf16.msra.mxu0 0
    %936 = vmatprep.subr.bf16.mxu0 0
    %937 = vmatpush1.bf16.msra.mxu0 %v920
    %938 = vmatprep.subr.bf16.mxu0 0
    %939 = vmatpush2.bf16.msra.mxu0 0
    %940 = vmatprep.subr.bf16.mxu0 0
    %941 = vmatpush2.bf16.msra.mxu0 0
    %942 = vmatprep.subr.bf16.mxu0 0
    %943 = vmatpush2.bf16.msra.mxu0 0
    %944 = vmatprep.subr.bf16.mxu0 0
    %945 = vmatpush2.bf16.msra.mxu0 0
    %946 = vmatprep.subr.bf16.mxu0 0
    %947 = vmatpush2.bf16.msra.mxu0 0
    %948 = vmatprep.subr.bf16.mxu0 0
    %949 = vmatpush2.bf16.msra.mxu0 0
    %950 = vmatprep.subr.bf16.mxu0 0
    %951 = vmatpush2.bf16.msra.mxu0 0
    %952 = vmatprep.subr.bf16.mxu0 0
    %953 = vmatpush2.bf16.msra.mxu0 0
    %954 = vmatprep.mubr.bf16.mxu0 0
    %955 = vmatmul.mubr.bf16.gmra.mxu0 %v914
    %v956 = vpop.f32.mrf.mxu0
    %v957 = vadd.f32 0.0, %v956
    %v958 = vpop.f32.mrf.mxu0
    %v959 = vpop.f32.mrf.mxu0
    %v960 = vadd.f32 0.0, %v959
    %v961 = vpop.f32.mrf.mxu0
    %962 = vmatprep.mubr.bf16.mxu0 0
    %963 = vmatmul.mubr.bf16.gmra.mxu0 %v917
    %v964 = vpop.f32.mrf.mxu0
    %v965 = vadd.f32 0.0, %v964
    %v966 = vpop.f32.mrf.mxu0
    %v967 = vpop.f32.mrf.mxu0
    %v968 = vadd.f32 0.0, %v967
    %v969 = vpop.f32.mrf.mxu0
    %970 = vdwg.mxu0
    %v971 = vadd.f32 %v885, %v957
    %v972 = vadd.f32 %v888, %v960
    %v973 = vadd.f32 %v893, %v965
    %v974 = vadd.f32 %v896, %v968
    %v975 = vrot.slane %v755, 5
    %v976 = vrot.slane %v756, 5
    %v977 = vrot.slane %v757, 5
    %v978 = vrot.slane %v758, 5
    %v979 = vsel %vm477, %v977, %v978
    %v980 = vsel %vm477, %v976, %v977
    %v981 = vsel %vm477, %v975, %v976
    %v982 = vsel %vm477, %v978, %v975
    %v983 = vsel %vm486, %v982, 0.0
    %v984 = vsel %vm487, %v981, 0.0
    %v985 = vsel %vm488, %v980, 0.0
    %v986 = vsel %vm489, %v979, 0.0
    %v987 = vpack.c.bf16 %v984, %v983
    %v988 = vpack.c.bf16 %v986, %v985
    %v990 = vsel %vm781, %v987, 0
    %v993 = vsel %vm781, %v988, 0
    %v996 = vsel %vm788, %v761, 0
    %998 = vmatprep.subr.bf16.mxu0 0
    %999 = vmatpush1.bf16.msra.mxu0 0
    %1000 = vmatprep.subr.bf16.mxu0 0
    %1001 = vmatpush1.bf16.msra.mxu0 0
    %1002 = vmatprep.subr.bf16.mxu0 0
    %1003 = vmatpush1.bf16.msra.mxu0 0
    %1004 = vmatprep.subr.bf16.mxu0 0
    %1005 = vmatpush1.bf16.msra.mxu0 0
    %1006 = vmatprep.subr.bf16.mxu0 0
    %1007 = vmatpush1.bf16.msra.mxu0 0
    %1008 = vmatprep.subr.bf16.mxu0 0
    %1009 = vmatpush1.bf16.msra.mxu0 0
    %1010 = vmatprep.subr.bf16.mxu0 0
    %1011 = vmatpush1.bf16.msra.mxu0 0
    %1012 = vmatprep.subr.bf16.mxu0 0
    %1013 = vmatpush1.bf16.msra.mxu0 %v996
    %1014 = vmatprep.subr.bf16.mxu0 0
    %1015 = vmatpush2.bf16.msra.mxu0 0
    %1016 = vmatprep.subr.bf16.mxu0 0
    %1017 = vmatpush2.bf16.msra.mxu0 0
    %1018 = vmatprep.subr.bf16.mxu0 0
    %1019 = vmatpush2.bf16.msra.mxu0 0
    %1020 = vmatprep.subr.bf16.mxu0 0
    %1021 = vmatpush2.bf16.msra.mxu0 0
    %1022 = vmatprep.subr.bf16.mxu0 0
    %1023 = vmatpush2.bf16.msra.mxu0 0
    %1024 = vmatprep.subr.bf16.mxu0 0
    %1025 = vmatpush2.bf16.msra.mxu0 0
    %1026 = vmatprep.subr.bf16.mxu0 0
    %1027 = vmatpush2.bf16.msra.mxu0 0
    %1028 = vmatprep.subr.bf16.mxu0 0
    %1029 = vmatpush2.bf16.msra.mxu0 0
    %1030 = vmatprep.mubr.bf16.mxu0 0
    %1031 = vmatmul.mubr.bf16.gmra.mxu0 %v990
    %v1032 = vpop.f32.mrf.mxu0
    %v1033 = vadd.f32 0.0, %v1032
    %v1034 = vpop.f32.mrf.mxu0
    %v1035 = vpop.f32.mrf.mxu0
    %v1036 = vadd.f32 0.0, %v1035
    %v1037 = vpop.f32.mrf.mxu0
    %1038 = vmatprep.mubr.bf16.mxu0 0
    %1039 = vmatmul.mubr.bf16.gmra.mxu0 %v993
    %v1040 = vpop.f32.mrf.mxu0
    %v1041 = vadd.f32 0.0, %v1040
    %v1042 = vpop.f32.mrf.mxu0
    %v1043 = vpop.f32.mrf.mxu0
    %v1044 = vadd.f32 0.0, %v1043
    %v1045 = vpop.f32.mrf.mxu0
    %1046 = vdwg.mxu0
    %v1047 = vadd.f32 %v971, %v1033
    %v1048 = vadd.f32 %v972, %v1036
    %v1049 = vadd.f32 %v973, %v1041
    %v1050 = vadd.f32 %v974, %v1044
    %v1051 = vrot.slane %v755, 6
    %v1052 = vrot.slane %v756, 6
    %v1053 = vrot.slane %v757, 6
    %v1054 = vrot.slane %v758, 6
    %v1055 = vsel %vm566, %v1053, %v1054
    %v1056 = vsel %vm566, %v1052, %v1053
    %v1057 = vsel %vm566, %v1051, %v1052
    %v1058 = vsel %vm566, %v1054, %v1051
    %v1059 = vsel %vm575, %v1058, 0.0
    %v1060 = vsel %vm576, %v1057, 0.0
    %v1061 = vsel %vm577, %v1056, 0.0
    %v1062 = vsel %vm578, %v1055, 0.0
    %v1063 = vpack.c.bf16 %v1060, %v1059
    %v1064 = vpack.c.bf16 %v1062, %v1061
    %v1066 = vsel %vm781, %v1063, 0
    %v1069 = vsel %vm781, %v1064, 0
    %v1072 = vsel %vm788, %v762, 0
    %1074 = vmatprep.subr.bf16.mxu0 0
    %1075 = vmatpush1.bf16.msra.mxu0 0
    %1076 = vmatprep.subr.bf16.mxu0 0
    %1077 = vmatpush1.bf16.msra.mxu0 0
    %1078 = vmatprep.subr.bf16.mxu0 0
    %1079 = vmatpush1.bf16.msra.mxu0 0
    %1080 = vmatprep.subr.bf16.mxu0 0
    %1081 = vmatpush1.bf16.msra.mxu0 0
    %1082 = vmatprep.subr.bf16.mxu0 0
    %1083 = vmatpush1.bf16.msra.mxu0 0
    %1084 = vmatprep.subr.bf16.mxu0 0
    %1085 = vmatpush1.bf16.msra.mxu0 0
    %1086 = vmatprep.subr.bf16.mxu0 0
    %1087 = vmatpush1.bf16.msra.mxu0 0
    %1088 = vmatprep.subr.bf16.mxu0 0
    %1089 = vmatpush1.bf16.msra.mxu0 %v1072
    %1090 = vmatprep.subr.bf16.mxu0 0
    %1091 = vmatpush2.bf16.msra.mxu0 0
    %1092 = vmatprep.subr.bf16.mxu0 0
    %1093 = vmatpush2.bf16.msra.mxu0 0
    %1094 = vmatprep.subr.bf16.mxu0 0
    %1095 = vmatpush2.bf16.msra.mxu0 0
    %1096 = vmatprep.subr.bf16.mxu0 0
    %1097 = vmatpush2.bf16.msra.mxu0 0
    %1098 = vmatprep.subr.bf16.mxu0 0
    %1099 = vmatpush2.bf16.msra.mxu0 0
    %1100 = vmatprep.subr.bf16.mxu0 0
    %1101 = vmatpush2.bf16.msra.mxu0 0
    %1102 = vmatprep.subr.bf16.mxu0 0
    %1103 = vmatpush2.bf16.msra.mxu0 0
    %1104 = vmatprep.subr.bf16.mxu0 0
    %1105 = vmatpush2.bf16.msra.mxu0 0
    %1106 = vmatprep.mubr.bf16.mxu0 0
    %1107 = vmatmul.mubr.bf16.gmra.mxu0 %v1066
    %v1108 = vpop.f32.mrf.mxu0
    %v1109 = vadd.f32 0.0, %v1108
    %v1110 = vpop.f32.mrf.mxu0
    %v1111 = vpop.f32.mrf.mxu0
    %v1112 = vadd.f32 0.0, %v1111
    %v1113 = vpop.f32.mrf.mxu0
    %1114 = vmatprep.mubr.bf16.mxu0 0
    %1115 = vmatmul.mubr.bf16.gmra.mxu0 %v1069
    %v1116 = vpop.f32.mrf.mxu0
    %v1117 = vadd.f32 0.0, %v1116
    %v1118 = vpop.f32.mrf.mxu0
    %v1119 = vpop.f32.mrf.mxu0
    %v1120 = vadd.f32 0.0, %v1119
    %v1121 = vpop.f32.mrf.mxu0
    %1122 = vdwg.mxu0
    %v1123 = vadd.f32 %v1047, %v1109
    %v1124 = vadd.f32 %v1048, %v1112
    %v1125 = vadd.f32 %v1049, %v1117
    %v1126 = vadd.f32 %v1050, %v1120
    %v1127 = vrot.slane %v755, 7
    %v1128 = vrot.slane %v756, 7
    %v1129 = vrot.slane %v757, 7
    %v1130 = vrot.slane %v758, 7
    %v1131 = vsel %vm655, %v1129, %v1130
    %v1132 = vsel %vm655, %v1128, %v1129
    %v1133 = vsel %vm655, %v1127, %v1128
    %v1134 = vsel %vm655, %v1130, %v1127
    %v1135 = vsel %vm664, %v1134, 0.0
    %v1136 = vsel %vm665, %v1133, 0.0
    %v1137 = vsel %vm666, %v1132, 0.0
    %v1138 = vsel %vm667, %v1131, 0.0
    %v1139 = vpack.c.bf16 %v1136, %v1135
    %v1140 = vpack.c.bf16 %v1138, %v1137
    %v1142 = vsel %vm781, %v1139, 0
    %v1145 = vsel %vm781, %v1140, 0
    %v1148 = vsel %vm788, %v763, 0
    %1150 = vmatprep.subr.bf16.mxu0 0
    %1151 = vmatpush1.bf16.msra.mxu0 0
    %1152 = vmatprep.subr.bf16.mxu0 0
    %1153 = vmatpush1.bf16.msra.mxu0 0
    %1154 = vmatprep.subr.bf16.mxu0 0
    %1155 = vmatpush1.bf16.msra.mxu0 0
    %1156 = vmatprep.subr.bf16.mxu0 0
    %1157 = vmatpush1.bf16.msra.mxu0 0
    %1158 = vmatprep.subr.bf16.mxu0 0
    %1159 = vmatpush1.bf16.msra.mxu0 0
    %1160 = vmatprep.subr.bf16.mxu0 0
    %1161 = vmatpush1.bf16.msra.mxu0 0
    %1162 = vmatprep.subr.bf16.mxu0 0
    %1163 = vmatpush1.bf16.msra.mxu0 0
    %1164 = vmatprep.subr.bf16.mxu0 0
    %1165 = vmatpush1.bf16.msra.mxu0 %v1148
    %1166 = vmatprep.subr.bf16.mxu0 0
    %1167 = vmatpush2.bf16.msra.mxu0 0
    %1168 = vmatprep.subr.bf16.mxu0 0
    %1169 = vmatpush2.bf16.msra.mxu0 0
    %1170 = vmatprep.subr.bf16.mxu0 0
    %1171 = vmatpush2.bf16.msra.mxu0 0
    %1172 = vmatprep.subr.bf16.mxu0 0
    %1173 = vmatpush2.bf16.msra.mxu0 0
    %1174 = vmatprep.subr.bf16.mxu0 0
    %1175 = vmatpush2.bf16.msra.mxu0 0
    %1176 = vmatprep.subr.bf16.mxu0 0
    %1177 = vmatpush2.bf16.msra.mxu0 0
    %1178 = vmatprep.subr.bf16.mxu0 0
    %1179 = vmatpush2.bf16.msra.mxu0 0
    %1180 = vmatprep.subr.bf16.mxu0 0
    %1181 = vmatpush2.bf16.msra.mxu0 0
    %1182 = vmatprep.mubr.bf16.mxu0 0
    %1183 = vmatmul.mubr.bf16.gmra.mxu0 %v1142
    %v1184 = vpop.f32.mrf.mxu0
    %v1185 = vadd.f32 0.0, %v1184
    %v1186 = vpop.f32.mrf.mxu0
    %v1187 = vpop.f32.mrf.mxu0
    %v1188 = vadd.f32 0.0, %v1187
    %v1189 = vpop.f32.mrf.mxu0
    %1190 = vmatprep.mubr.bf16.mxu0 0
    %1191 = vmatmul.mubr.bf16.gmra.mxu0 %v1145
    %v1192 = vpop.f32.mrf.mxu0
    %v1193 = vadd.f32 0.0, %v1192
    %v1194 = vpop.f32.mrf.mxu0
    %v1195 = vpop.f32.mrf.mxu0
    %v1196 = vadd.f32 0.0, %v1195
    %v1197 = vpop.f32.mrf.mxu0
    %1198 = vdwg.mxu0
    %v1199 = vadd.f32 %v1123, %v1185
    %v1200 = vadd.f32 %v1124, %v1188
    %v1201 = vadd.f32 %v1125, %v1193
    %v1202 = vadd.f32 %v1126, %v1196
    %v1203 = vld [vmem:[%s4] sm:$0x1]
    %v1205 = vlaneseq
    %v1206 = vshrl.u32 %v1205, 7
    %v1207 = vsub.s32 0, %v1206
    %v1208 = vrot.slane %v1203, %v1207
    %v1210 = vadd.f32 %v1199, %v1208
    %v1211 = vadd.f32 %v1200, %v1208
    %v1212 = vadd.f32 %v1201, %v1208
    %v1213 = vadd.f32 %v1202, %v1208
    %vm1214 = vcmp.gt.f32.partialorder %v1210, 0.0
    %vm1215 = vcmp.gt.f32.partialorder %v1211, 0.0
    %vm1216 = vcmp.gt.f32.partialorder %v1212, 0.0
    %vm1217 = vcmp.gt.f32.partialorder %v1213, 0.0
    %v1218 = vmul.f32 %v1210, 0.01
    %v1219 = vmul.f32 %v1211, 0.01
    %v1220 = vmul.f32 %v1212, 0.01
    %v1221 = vmul.f32 %v1213, 0.01
    %v1222 = vsel %vm1214, %v1210, %v1218
    %v1223 = vsel %vm1215, %v1211, %v1219
    %v1224 = vsel %vm1216, %v1212, %v1220
    %v1225 = vsel %vm1217, %v1213, %v1221
    %v1226 = vld [vmem:[%s5] sm:$0x3]
    %v1227 = vld [vmem:[%s6] sm:$0x1]
    %v1229 = vlaneseq
    %v1230 = vshrl.u32 %v1229, 7
    %v1231 = vsub.s32 0, %v1230
    %v1232 = vrot.slane %v1227, %v1231
    %v1235 = vsel %vm269, %v1226, 0
    %1237 = vmatprep.subr.bf16.mxu0 0
    %1238 = vmatpush1.bf16.msra.mxu0 0
    %1239 = vmatprep.subr.bf16.mxu0 0
    %1240 = vmatpush1.bf16.msra.mxu0 0
    %1241 = vmatprep.subr.bf16.mxu0 0
    %1242 = vmatpush1.bf16.msra.mxu0 0
    %1243 = vmatprep.subr.bf16.mxu0 0
    %1244 = vmatpush1.bf16.msra.mxu0 0
    %1245 = vmatprep.subr.bf16.mxu0 0
    %1246 = vmatpush1.bf16.msra.mxu0 0
    %1247 = vmatprep.subr.bf16.mxu0 0
    %1248 = vmatpush1.bf16.msra.mxu0 0
    %1249 = vmatprep.subr.bf16.mxu0 0
    %1250 = vmatpush1.bf16.msra.mxu0 0
    %1251 = vmatprep.subr.bf16.mxu0 0
    %1252 = vmatpush1.bf16.msra.mxu0 %v1235
    %1253 = vmatprep.subr.bf16.mxu0 0
    %1254 = vmatpush2.bf16.msra.mxu0 0
    %1255 = vmatprep.subr.bf16.mxu0 0
    %1256 = vmatpush2.bf16.msra.mxu0 0
    %1257 = vmatprep.subr.bf16.mxu0 0
    %1258 = vmatpush2.bf16.msra.mxu0 0
    %1259 = vmatprep.subr.bf16.mxu0 0
    %1260 = vmatpush2.bf16.msra.mxu0 0
    %1261 = vmatprep.subr.bf16.mxu0 0
    %1262 = vmatpush2.bf16.msra.mxu0 0
    %1263 = vmatprep.subr.bf16.mxu0 0
    %1264 = vmatpush2.bf16.msra.mxu0 0
    %1265 = vmatprep.subr.bf16.mxu0 0
    %1266 = vmatpush2.bf16.msra.mxu0 0
    %1267 = vmatprep.subr.bf16.mxu0 0
    %1268 = vmatpush2.bf16.msra.mxu0 0
    %1269 = vmatprep.mubr.bf16.mxu0 0
    %1270 = vmatmul.mubr.bf16.gmra.mxu0 %v323
    %v1271 = vpop.f32.mrf.mxu0
    %v1272 = vadd.f32 %v1232, %v1271
    %v1273 = vpop.f32.mrf.mxu0
    %v1274 = vpop.f32.mrf.mxu0
    %v1275 = vadd.f32 %v1232, %v1274
    %v1276 = vpop.f32.mrf.mxu0
    %1277 = vmatprep.mubr.bf16.mxu0 0
    %1278 = vmatmul.mubr.bf16.gmra.mxu0 %v326
    %v1279 = vpop.f32.mrf.mxu0
    %v1280 = vadd.f32 %v1232, %v1279
    %v1281 = vpop.f32.mrf.mxu0
    %v1282 = vpop.f32.mrf.mxu0
    %v1283 = vadd.f32 %v1232, %v1282
    %v1284 = vpop.f32.mrf.mxu0
    %1285 = vdwg.mxu0
    %v1286 = vadd.f32 %v1222, %v1272
    %v1287 = vadd.f32 %v1223, %v1275
    %v1288 = vadd.f32 %v1224, %v1280
    %v1289 = vadd.f32 %v1225, %v1283
    %v1290 = vld [vmem:[#allocation8] sm:$0xf]
    %v1291 = vld [vmem:[#allocation8 + $0x4] sm:$0xf]
    %v1292 = vld [vmem:[#allocation8 + $0x8] sm:$0xf]
    %v1293 = vld [vmem:[#allocation8 + $0xc] sm:$0xf]
    %v1294 = vld [vmem:[#allocation8 + $0x10] sm:$0xf]
    %v1295 = vld [vmem:[#allocation8 + $0x14] sm:$0xf]
    %v1296 = vpack.c.bf16 %v1287, %v1286
    %v1297 = vpack.c.bf16 %v1289, %v1288
    %vm1298 = vcmp.ge.s32.totalorder %v223, 10
    %vm1299 = vcmp.ge.s32.totalorder %v224, 10
    %vm1300 = vcmp.ge.s32.totalorder %v225, 10
    %vm1301 = vcmp.ge.s32.totalorder %v226, 10
    %v1302 = vrot.slane %v1286, 6
    %v1303 = vrot.slane %v1287, 6
    %v1304 = vrot.slane %v1288, 6
    %v1305 = vrot.slane %v1289, 6
    %v1306 = vsel %vm566, %v1304, %v1305
    %v1307 = vsel %vm566, %v1303, %v1304
    %v1308 = vsel %vm566, %v1302, %v1303
    %v1309 = vsel %vm566, %v1305, %v1302
    %v1310 = vsel %vm1298, 1, 0
    %v1311 = vsel %vm1299, 1, 0
    %v1312 = vsel %vm1300, 1, 0
    %v1313 = vsel %vm1301, 1, 0
    %vm1314 = vcmp.eq.s32.totalorder %v1310, 1
    %vm1315 = vcmp.eq.s32.totalorder %v1311, 1
    %vm1316 = vcmp.eq.s32.totalorder %v1312, 1
    %vm1317 = vcmp.eq.s32.totalorder %v1313, 1
    %v1318 = vsel %vm1314, %v1306, 0.0
    %v1319 = vsel %vm1315, %v1309, 0.0
    %v1320 = vsel %vm1316, %v1308, 0.0
    %v1321 = vsel %vm1317, %v1307, 0.0
    %v1322 = vpack.c.bf16 %v1319, %v1318
    %v1323 = vpack.c.bf16 %v1321, %v1320
    %v1325 = vsel %vm781, %v1322, 0
    %v1328 = vsel %vm781, %v1323, 0
    %v1331 = vsel %vm788, %v1290, 0
    %1333 = vmatprep.subr.bf16.mxu0 0
    %1334 = vmatpush1.bf16.msra.mxu0 0
    %1335 = vmatprep.subr.bf16.mxu0 0
    %1336 = vmatpush1.bf16.msra.mxu0 0
    %1337 = vmatprep.subr.bf16.mxu0 0
    %1338 = vmatpush1.bf16.msra.mxu0 0
    %1339 = vmatprep.subr.bf16.mxu0 0
    %1340 = vmatpush1.bf16.msra.mxu0 0
    %1341 = vmatprep.subr.bf16.mxu0 0
    %1342 = vmatpush1.bf16.msra.mxu0 0
    %1343 = vmatprep.subr.bf16.mxu0 0
    %1344 = vmatpush1.bf16.msra.mxu0 0
    %1345 = vmatprep.subr.bf16.mxu0 0
    %1346 = vmatpush1.bf16.msra.mxu0 0
    %1347 = vmatprep.subr.bf16.mxu0 0
    %1348 = vmatpush1.bf16.msra.mxu0 %v1331
    %1349 = vmatprep.subr.bf16.mxu0 0
    %1350 = vmatpush2.bf16.msra.mxu0 0
    %1351 = vmatprep.subr.bf16.mxu0 0
    %1352 = vmatpush2.bf16.msra.mxu0 0
    %1353 = vmatprep.subr.bf16.mxu0 0
    %1354 = vmatpush2.bf16.msra.mxu0 0
    %1355 = vmatprep.subr.bf16.mxu0 0
    %1356 = vmatpush2.bf16.msra.mxu0 0
    %1357 = vmatprep.subr.bf16.mxu0 0
    %1358 = vmatpush2.bf16.msra.mxu0 0
    %1359 = vmatprep.subr.bf16.mxu0 0
    %1360 = vmatpush2.bf16.msra.mxu0 0
    %1361 = vmatprep.subr.bf16.mxu0 0
    %1362 = vmatpush2.bf16.msra.mxu0 0
    %1363 = vmatprep.subr.bf16.mxu0 0
    %1364 = vmatpush2.bf16.msra.mxu0 0
    %1365 = vmatprep.mubr.bf16.mxu0 0
    %1366 = vmatmul.mubr.bf16.gmra.mxu0 %v1325
    %v1367 = vpop.f32.mrf.mxu0
    %v1368 = vadd.f32 0.0, %v1367
    %v1369 = vpop.f32.mrf.mxu0
    %v1370 = vpop.f32.mrf.mxu0
    %v1371 = vadd.f32 0.0, %v1370
    %v1372 = vpop.f32.mrf.mxu0
    %1373 = vmatprep.mubr.bf16.mxu0 0
    %1374 = vmatmul.mubr.bf16.gmra.mxu0 %v1328
    %v1375 = vpop.f32.mrf.mxu0
    %v1376 = vadd.f32 0.0, %v1375
    %v1377 = vpop.f32.mrf.mxu0
    %v1378 = vpop.f32.mrf.mxu0
    %v1379 = vadd.f32 0.0, %v1378
    %v1380 = vpop.f32.mrf.mxu0
    %1381 = vdwg.mxu0
    %v1383 = vsel %vm781, %v1296, 0
    %v1386 = vsel %vm781, %v1297, 0
    %v1389 = vsel %vm788, %v1295, 0
    %1391 = vmatprep.subr.bf16.mxu0 0
    %1392 = vmatpush1.bf16.msra.mxu0 0
    %1393 = vmatprep.subr.bf16.mxu0 0
    %1394 = vmatpush1.bf16.msra.mxu0 0
    %1395 = vmatprep.subr.bf16.mxu0 0
    %1396 = vmatpush1.bf16.msra.mxu0 0
    %1397 = vmatprep.subr.bf16.mxu0 0
    %1398 = vmatpush1.bf16.msra.mxu0 0
    %1399 = vmatprep.subr.bf16.mxu0 0
    %1400 = vmatpush1.bf16.msra.mxu0 0
    %1401 = vmatprep.subr.bf16.mxu0 0
    %1402 = vmatpush1.bf16.msra.mxu0 0
    %1403 = vmatprep.subr.bf16.mxu0 0
    %1404 = vmatpush1.bf16.msra.mxu0 0
    %1405 = vmatprep.subr.bf16.mxu0 0
    %1406 = vmatpush1.bf16.msra.mxu0 %v1389
    %1407 = vmatprep.subr.bf16.mxu0 0
    %1408 = vmatpush2.bf16.msra.mxu0 0
    %1409 = vmatprep.subr.bf16.mxu0 0
    %1410 = vmatpush2.bf16.msra.mxu0 0
    %1411 = vmatprep.subr.bf16.mxu0 0
    %1412 = vmatpush2.bf16.msra.mxu0 0
    %1413 = vmatprep.subr.bf16.mxu0 0
    %1414 = vmatpush2.bf16.msra.mxu0 0
    %1415 = vmatprep.subr.bf16.mxu0 0
    %1416 = vmatpush2.bf16.msra.mxu0 0
    %1417 = vmatprep.subr.bf16.mxu0 0
    %1418 = vmatpush2.bf16.msra.mxu0 0
    %1419 = vmatprep.subr.bf16.mxu0 0
    %1420 = vmatpush2.bf16.msra.mxu0 0
    %1421 = vmatprep.subr.bf16.mxu0 0
    %1422 = vmatpush2.bf16.msra.mxu0 0
    %1423 = vmatprep.mubr.bf16.mxu0 0
    %1424 = vmatmul.mubr.bf16.gmra.mxu0 %v1383
    %v1425 = vpop.f32.mrf.mxu0
    %v1426 = vadd.f32 %v1368, %v1425
    %v1427 = vpop.f32.mrf.mxu0
    %v1428 = vpop.f32.mrf.mxu0
    %v1429 = vadd.f32 %v1371, %v1428
    %v1430 = vpop.f32.mrf.mxu0
    %1431 = vmatprep.mubr.bf16.mxu0 0
    %1432 = vmatmul.mubr.bf16.gmra.mxu0 %v1386
    %v1433 = vpop.f32.mrf.mxu0
    %v1434 = vadd.f32 %v1376, %v1433
    %v1435 = vpop.f32.mrf.mxu0
    %v1436 = vpop.f32.mrf.mxu0
    %v1437 = vadd.f32 %v1379, %v1436
    %v1438 = vpop.f32.mrf.mxu0
    %1439 = vdwg.mxu0
    %vm1440 = vcmp.ge.s32.totalorder %v223, 8
    %vm1441 = vcmp.ge.s32.totalorder %v224, 8
    %vm1442 = vcmp.ge.s32.totalorder %v225, 8
    %vm1443 = vcmp.ge.s32.totalorder %v226, 8
    %v1444 = vsel %vm1440, 1, 0
    %v1445 = vsel %vm1441, 1, 0
    %v1446 = vsel %vm1442, 1, 0
    %v1447 = vsel %vm1443, 1, 0
    %vm1448 = vcmp.eq.s32.totalorder %v1444, 1
    %vm1449 = vcmp.eq.s32.totalorder %v1445, 1
    %vm1450 = vcmp.eq.s32.totalorder %v1446, 1
    %vm1451 = vcmp.eq.s32.totalorder %v1447, 1
    %v1452 = vsel %vm1448, %v1289, 0.0
    %v1453 = vsel %vm1449, %v1286, 0.0
    %v1454 = vsel %vm1450, %v1287, 0.0
    %v1455 = vsel %vm1451, %v1288, 0.0
    %v1456 = vpack.c.bf16 %v1453, %v1452
    %v1457 = vpack.c.bf16 %v1455, %v1454
    %v1459 = vsel %vm781, %v1456, 0
    %v1462 = vsel %vm781, %v1457, 0
    %v1465 = vsel %vm788, %v1291, 0
    %1467 = vmatprep.subr.bf16.mxu0 0
    %1468 = vmatpush1.bf16.msra.mxu0 0
    %1469 = vmatprep.subr.bf16.mxu0 0
    %1470 = vmatpush1.bf16.msra.mxu0 0
    %1471 = vmatprep.subr.bf16.mxu0 0
    %1472 = vmatpush1.bf16.msra.mxu0 0
    %1473 = vmatprep.subr.bf16.mxu0 0
    %1474 = vmatpush1.bf16.msra.mxu0 0
    %1475 = vmatprep.subr.bf16.mxu0 0
    %1476 = vmatpush1.bf16.msra.mxu0 0
    %1477 = vmatprep.subr.bf16.mxu0 0
    %1478 = vmatpush1.bf16.msra.mxu0 0
    %1479 = vmatprep.subr.bf16.mxu0 0
    %1480 = vmatpush1.bf16.msra.mxu0 0
    %1481 = vmatprep.subr.bf16.mxu0 0
    %1482 = vmatpush1.bf16.msra.mxu0 %v1465
    %1483 = vmatprep.subr.bf16.mxu0 0
    %1484 = vmatpush2.bf16.msra.mxu0 0
    %1485 = vmatprep.subr.bf16.mxu0 0
    %1486 = vmatpush2.bf16.msra.mxu0 0
    %1487 = vmatprep.subr.bf16.mxu0 0
    %1488 = vmatpush2.bf16.msra.mxu0 0
    %1489 = vmatprep.subr.bf16.mxu0 0
    %1490 = vmatpush2.bf16.msra.mxu0 0
    %1491 = vmatprep.subr.bf16.mxu0 0
    %1492 = vmatpush2.bf16.msra.mxu0 0
    %1493 = vmatprep.subr.bf16.mxu0 0
    %1494 = vmatpush2.bf16.msra.mxu0 0
    %1495 = vmatprep.subr.bf16.mxu0 0
    %1496 = vmatpush2.bf16.msra.mxu0 0
    %1497 = vmatprep.subr.bf16.mxu0 0
    %1498 = vmatpush2.bf16.msra.mxu0 0
    %1499 = vmatprep.mubr.bf16.mxu0 0
    %1500 = vmatmul.mubr.bf16.gmra.mxu0 %v1459
    %v1501 = vpop.f32.mrf.mxu0
    %v1502 = vadd.f32 0.0, %v1501
    %v1503 = vpop.f32.mrf.mxu0
    %v1504 = vpop.f32.mrf.mxu0
    %v1505 = vadd.f32 0.0, %v1504
    %v1506 = vpop.f32.mrf.mxu0
    %1507 = vmatprep.mubr.bf16.mxu0 0
    %1508 = vmatmul.mubr.bf16.gmra.mxu0 %v1462
    %v1509 = vpop.f32.mrf.mxu0
    %v1510 = vadd.f32 0.0, %v1509
    %v1511 = vpop.f32.mrf.mxu0
    %v1512 = vpop.f32.mrf.mxu0
    %v1513 = vadd.f32 0.0, %v1512
    %v1514 = vpop.f32.mrf.mxu0
    %1515 = vdwg.mxu0
    %v1516 = vadd.f32 %v1426, %v1502
    %v1517 = vadd.f32 %v1429, %v1505
    %v1518 = vadd.f32 %v1434, %v1510
    %v1519 = vadd.f32 %v1437, %v1513
    %vm1520 = vcmp.ge.s32.totalorder %v223, 6
    %vm1521 = vcmp.ge.s32.totalorder %v224, 6
    %vm1522 = vcmp.ge.s32.totalorder %v225, 6
    %vm1523 = vcmp.ge.s32.totalorder %v226, 6
    %v1524 = vrot.slane %v1286, 2
    %v1525 = vrot.slane %v1287, 2
    %v1526 = vrot.slane %v1288, 2
    %v1527 = vrot.slane %v1289, 2
    %vm1528 = vcmp.lt.s32.totalorder %v175, 6
    %v1529 = vsel %vm1528, %v1526, %v1527
    %v1530 = vsel %vm1528, %v1525, %v1526
    %v1531 = vsel %vm1528, %v1524, %v1525
    %v1532 = vsel %vm1528, %v1527, %v1524
    %v1533 = vsel %vm1520, 1, 0
    %v1534 = vsel %vm1521, 1, 0
    %v1535 = vsel %vm1522, 1, 0
    %v1536 = vsel %vm1523, 1, 0
    %vm1537 = vcmp.eq.s32.totalorder %v1533, 1
    %vm1538 = vcmp.eq.s32.totalorder %v1534, 1
    %vm1539 = vcmp.eq.s32.totalorder %v1535, 1
    %vm1540 = vcmp.eq.s32.totalorder %v1536, 1
    %v1541 = vsel %vm1537, %v1532, 0.0
    %v1542 = vsel %vm1538, %v1531, 0.0
    %v1543 = vsel %vm1539, %v1530, 0.0
    %v1544 = vsel %vm1540, %v1529, 0.0
    %v1545 = vpack.c.bf16 %v1542, %v1541
    %v1546 = vpack.c.bf16 %v1544, %v1543
    %v1548 = vsel %vm781, %v1545, 0
    %v1551 = vsel %vm781, %v1546, 0
    %v1554 = vsel %vm788, %v1292, 0
    %1556 = vmatprep.subr.bf16.mxu0 0
    %1557 = vmatpush1.bf16.msra.mxu0 0
    %1558 = vmatprep.subr.bf16.mxu0 0
    %1559 = vmatpush1.bf16.msra.mxu0 0
    %1560 = vmatprep.subr.bf16.mxu0 0
    %1561 = vmatpush1.bf16.msra.mxu0 0
    %1562 = vmatprep.subr.bf16.mxu0 0
    %1563 = vmatpush1.bf16.msra.mxu0 0
    %1564 = vmatprep.subr.bf16.mxu0 0
    %1565 = vmatpush1.bf16.msra.mxu0 0
    %1566 = vmatprep.subr.bf16.mxu0 0
    %1567 = vmatpush1.bf16.msra.mxu0 0
    %1568 = vmatprep.subr.bf16.mxu0 0
    %1569 = vmatpush1.bf16.msra.mxu0 0
    %1570 = vmatprep.subr.bf16.mxu0 0
    %1571 = vmatpush1.bf16.msra.mxu0 %v1554
    %1572 = vmatprep.subr.bf16.mxu0 0
    %1573 = vmatpush2.bf16.msra.mxu0 0
    %1574 = vmatprep.subr.bf16.mxu0 0
    %1575 = vmatpush2.bf16.msra.mxu0 0
    %1576 = vmatprep.subr.bf16.mxu0 0
    %1577 = vmatpush2.bf16.msra.mxu0 0
    %1578 = vmatprep.subr.bf16.mxu0 0
    %1579 = vmatpush2.bf16.msra.mxu0 0
    %1580 = vmatprep.subr.bf16.mxu0 0
    %1581 = vmatpush2.bf16.msra.mxu0 0
    %1582 = vmatprep.subr.bf16.mxu0 0
    %1583 = vmatpush2.bf16.msra.mxu0 0
    %1584 = vmatprep.subr.bf16.mxu0 0
    %1585 = vmatpush2.bf16.msra.mxu0 0
    %1586 = vmatprep.subr.bf16.mxu0 0
    %1587 = vmatpush2.bf16.msra.mxu0 0
    %1588 = vmatprep.mubr.bf16.mxu0 0
    %1589 = vmatmul.mubr.bf16.gmra.mxu0 %v1548
    %v1590 = vpop.f32.mrf.mxu0
    %v1591 = vadd.f32 0.0, %v1590
    %v1592 = vpop.f32.mrf.mxu0
    %v1593 = vpop.f32.mrf.mxu0
    %v1594 = vadd.f32 0.0, %v1593
    %v1595 = vpop.f32.mrf.mxu0
    %1596 = vmatprep.mubr.bf16.mxu0 0
    %1597 = vmatmul.mubr.bf16.gmra.mxu0 %v1551
    %v1598 = vpop.f32.mrf.mxu0
    %v1599 = vadd.f32 0.0, %v1598
    %v1600 = vpop.f32.mrf.mxu0
    %v1601 = vpop.f32.mrf.mxu0
    %v1602 = vadd.f32 0.0, %v1601
    %v1603 = vpop.f32.mrf.mxu0
    %1604 = vdwg.mxu0
    %v1605 = vadd.f32 %v1516, %v1591
    %v1606 = vadd.f32 %v1517, %v1594
    %v1607 = vadd.f32 %v1518, %v1599
    %v1608 = vadd.f32 %v1519, %v1602
    %v1609 = vrot.slane %v1286, 4
    %v1610 = vrot.slane %v1287, 4
    %v1611 = vrot.slane %v1288, 4
    %v1612 = vrot.slane %v1289, 4
    %v1613 = vsel %vm388, %v1611, %v1612
    %v1614 = vsel %vm388, %v1610, %v1611
    %v1615 = vsel %vm388, %v1609, %v1610
    %v1616 = vsel %vm388, %v1612, %v1609
    %v1617 = vsel %vm397, %v1616, 0.0
    %v1618 = vsel %vm398, %v1615, 0.0
    %v1619 = vsel %vm399, %v1614, 0.0
    %v1620 = vsel %vm400, %v1613, 0.0
    %v1621 = vpack.c.bf16 %v1618, %v1617
    %v1622 = vpack.c.bf16 %v1620, %v1619
    %v1624 = vsel %vm781, %v1621, 0
    %v1627 = vsel %vm781, %v1622, 0
    %v1630 = vsel %vm788, %v1293, 0
    %1632 = vmatprep.subr.bf16.mxu0 0
    %1633 = vmatpush1.bf16.msra.mxu0 0
    %1634 = vmatprep.subr.bf16.mxu0 0
    %1635 = vmatpush1.bf16.msra.mxu0 0
    %1636 = vmatprep.subr.bf16.mxu0 0
    %1637 = vmatpush1.bf16.msra.mxu0 0
    %1638 = vmatprep.subr.bf16.mxu0 0
    %1639 = vmatpush1.bf16.msra.mxu0 0
    %1640 = vmatprep.subr.bf16.mxu0 0
    %1641 = vmatpush1.bf16.msra.mxu0 0
    %1642 = vmatprep.subr.bf16.mxu0 0
    %1643 = vmatpush1.bf16.msra.mxu0 0
    %1644 = vmatprep.subr.bf16.mxu0 0
    %1645 = vmatpush1.bf16.msra.mxu0 0
    %1646 = vmatprep.subr.bf16.mxu0 0
    %1647 = vmatpush1.bf16.msra.mxu0 %v1630
    %1648 = vmatprep.subr.bf16.mxu0 0
    %1649 = vmatpush2.bf16.msra.mxu0 0
    %1650 = vmatprep.subr.bf16.mxu0 0
    %1651 = vmatpush2.bf16.msra.mxu0 0
    %1652 = vmatprep.subr.bf16.mxu0 0
    %1653 = vmatpush2.bf16.msra.mxu0 0
    %1654 = vmatprep.subr.bf16.mxu0 0
    %1655 = vmatpush2.bf16.msra.mxu0 0
    %1656 = vmatprep.subr.bf16.mxu0 0
    %1657 = vmatpush2.bf16.msra.mxu0 0
    %1658 = vmatprep.subr.bf16.mxu0 0
    %1659 = vmatpush2.bf16.msra.mxu0 0
    %1660 = vmatprep.subr.bf16.mxu0 0
    %1661 = vmatpush2.bf16.msra.mxu0 0
    %1662 = vmatprep.subr.bf16.mxu0 0
    %1663 = vmatpush2.bf16.msra.mxu0 0
    %1664 = vmatprep.mubr.bf16.mxu0 0
    %1665 = vmatmul.mubr.bf16.gmra.mxu0 %v1624
    %v1666 = vpop.f32.mrf.mxu0
    %v1667 = vadd.f32 0.0, %v1666
    %v1668 = vpop.f32.mrf.mxu0
    %v1669 = vpop.f32.mrf.mxu0
    %v1670 = vadd.f32 0.0, %v1669
    %v1671 = vpop.f32.mrf.mxu0
    %1672 = vmatprep.mubr.bf16.mxu0 0
    %1673 = vmatmul.mubr.bf16.gmra.mxu0 %v1627
    %v1674 = vpop.f32.mrf.mxu0
    %v1675 = vadd.f32 0.0, %v1674
    %v1676 = vpop.f32.mrf.mxu0
    %v1677 = vpop.f32.mrf.mxu0
    %v1678 = vadd.f32 0.0, %v1677
    %v1679 = vpop.f32.mrf.mxu0
    %1680 = vdwg.mxu0
    %v1681 = vadd.f32 %v1605, %v1667
    %v1682 = vadd.f32 %v1606, %v1670
    %v1683 = vadd.f32 %v1607, %v1675
    %v1684 = vadd.f32 %v1608, %v1678
    %v1685 = vsel %vm575, %v1309, 0.0
    %v1686 = vsel %vm576, %v1308, 0.0
    %v1687 = vsel %vm577, %v1307, 0.0
    %v1688 = vsel %vm578, %v1306, 0.0
    %v1689 = vpack.c.bf16 %v1686, %v1685
    %v1690 = vpack.c.bf16 %v1688, %v1687
    %v1692 = vsel %vm781, %v1689, 0
    %v1695 = vsel %vm781, %v1690, 0
    %v1698 = vsel %vm788, %v1294, 0
    %1700 = vmatprep.subr.bf16.mxu0 0
    %1701 = vmatpush1.bf16.msra.mxu0 0
    %1702 = vmatprep.subr.bf16.mxu0 0
    %1703 = vmatpush1.bf16.msra.mxu0 0
    %1704 = vmatprep.subr.bf16.mxu0 0
    %1705 = vmatpush1.bf16.msra.mxu0 0
    %1706 = vmatprep.subr.bf16.mxu0 0
    %1707 = vmatpush1.bf16.msra.mxu0 0
    %1708 = vmatprep.subr.bf16.mxu0 0
    %1709 = vmatpush1.bf16.msra.mxu0 0
    %1710 = vmatprep.subr.bf16.mxu0 0
    %1711 = vmatpush1.bf16.msra.mxu0 0
    %1712 = vmatprep.subr.bf16.mxu0 0
    %1713 = vmatpush1.bf16.msra.mxu0 0
    %1714 = vmatprep.subr.bf16.mxu0 0
    %1715 = vmatpush1.bf16.msra.mxu0 %v1698
    %1716 = vmatprep.subr.bf16.mxu0 0
    %1717 = vmatpush2.bf16.msra.mxu0 0
    %1718 = vmatprep.subr.bf16.mxu0 0
    %1719 = vmatpush2.bf16.msra.mxu0 0
    %1720 = vmatprep.subr.bf16.mxu0 0
    %1721 = vmatpush2.bf16.msra.mxu0 0
    %1722 = vmatprep.subr.bf16.mxu0 0
    %1723 = vmatpush2.bf16.msra.mxu0 0
    %1724 = vmatprep.subr.bf16.mxu0 0
    %1725 = vmatpush2.bf16.msra.mxu0 0
    %1726 = vmatprep.subr.bf16.mxu0 0
    %1727 = vmatpush2.bf16.msra.mxu0 0
    %1728 = vmatprep.subr.bf16.mxu0 0
    %1729 = vmatpush2.bf16.msra.mxu0 0
    %1730 = vmatprep.subr.bf16.mxu0 0
    %1731 = vmatpush2.bf16.msra.mxu0 0
    %1732 = vmatprep.mubr.bf16.mxu0 0
    %1733 = vmatmul.mubr.bf16.gmra.mxu0 %v1692
    %v1734 = vpop.f32.mrf.mxu0
    %v1735 = vadd.f32 0.0, %v1734
    %v1736 = vpop.f32.mrf.mxu0
    %v1737 = vpop.f32.mrf.mxu0
    %v1738 = vadd.f32 0.0, %v1737
    %v1739 = vpop.f32.mrf.mxu0
    %1740 = vmatprep.mubr.bf16.mxu0 0
    %1741 = vmatmul.mubr.bf16.gmra.mxu0 %v1695
    %v1742 = vpop.f32.mrf.mxu0
    %v1743 = vadd.f32 0.0, %v1742
    %v1744 = vpop.f32.mrf.mxu0
    %v1745 = vpop.f32.mrf.mxu0
    %v1746 = vadd.f32 0.0, %v1745
    %v1747 = vpop.f32.mrf.mxu0
    %1748 = vdwg.mxu0
    %v1749 = vadd.f32 %v1681, %v1735
    %v1750 = vadd.f32 %v1682, %v1738
    %v1751 = vadd.f32 %v1683, %v1743
    %v1752 = vadd.f32 %v1684, %v1746
    %v1753 = vld [vmem:[%s8] sm:$0x1]
    %v1755 = vlaneseq
    %v1756 = vshrl.u32 %v1755, 7
    %v1757 = vsub.s32 0, %v1756
    %v1758 = vrot.slane %v1753, %v1757
    %v1760 = vadd.f32 %v1749, %v1758
    %v1761 = vadd.f32 %v1750, %v1758
    %v1762 = vadd.f32 %v1751, %v1758
    %v1763 = vadd.f32 %v1752, %v1758
    %vm1764 = vcmp.gt.f32.partialorder %v1760, 0.0
    %vm1765 = vcmp.gt.f32.partialorder %v1761, 0.0
    %vm1766 = vcmp.gt.f32.partialorder %v1762, 0.0
    %vm1767 = vcmp.gt.f32.partialorder %v1763, 0.0
    %v1768 = vmul.f32 %v1760, 0.01
    %v1769 = vmul.f32 %v1761, 0.01
    %v1770 = vmul.f32 %v1762, 0.01
    %v1771 = vmul.f32 %v1763, 0.01
    %v1772 = vsel %vm1764, %v1760, %v1768
    %v1773 = vsel %vm1765, %v1761, %v1769
    %v1774 = vsel %vm1766, %v1762, %v1770
    %v1775 = vsel %vm1767, %v1763, %v1771
    %v1776 = vld [vmem:[#allocation10] sm:$0xf]
    %v1777 = vld [vmem:[#allocation10 + $0x4] sm:$0xf]
    %v1778 = vld [vmem:[#allocation10 + $0x8] sm:$0xf]
    %v1779 = vld [vmem:[#allocation10 + $0xc] sm:$0xf]
    %v1780 = vld [vmem:[#allocation10 + $0x10] sm:$0xf]
    %v1781 = vld [vmem:[#allocation10 + $0x14] sm:$0xf]
    %v1782 = vpack.c.bf16 %v1773, %v1772
    %v1783 = vpack.c.bf16 %v1775, %v1774
    %v1784 = vrot.slane %v1772, 6
    %v1785 = vrot.slane %v1773, 6
    %v1786 = vrot.slane %v1774, 6
    %v1787 = vrot.slane %v1775, 6
    %v1788 = vsel %vm566, %v1786, %v1787
    %v1789 = vsel %vm566, %v1785, %v1786
    %v1790 = vsel %vm566, %v1784, %v1785
    %v1791 = vsel %vm566, %v1787, %v1784
    %v1792 = vsel %vm1314, %v1788, 0.0
    %v1793 = vsel %vm1315, %v1791, 0.0
    %v1794 = vsel %vm1316, %v1790, 0.0
    %v1795 = vsel %vm1317, %v1789, 0.0
    %v1796 = vpack.c.bf16 %v1793, %v1792
    %v1797 = vpack.c.bf16 %v1795, %v1794
    %v1799 = vsel %vm781, %v1796, 0
    %v1802 = vsel %vm781, %v1797, 0
    %v1805 = vsel %vm788, %v1776, 0
    %1807 = vmatprep.subr.bf16.mxu0 0
    %1808 = vmatpush1.bf16.msra.mxu0 0
    %1809 = vmatprep.subr.bf16.mxu0 0
    %1810 = vmatpush1.bf16.msra.mxu0 0
    %1811 = vmatprep.subr.bf16.mxu0 0
    %1812 = vmatpush1.bf16.msra.mxu0 0
    %1813 = vmatprep.subr.bf16.mxu0 0
    %1814 = vmatpush1.bf16.msra.mxu0 0
    %1815 = vmatprep.subr.bf16.mxu0 0
    %1816 = vmatpush1.bf16.msra.mxu0 0
    %1817 = vmatprep.subr.bf16.mxu0 0
    %1818 = vmatpush1.bf16.msra.mxu0 0
    %1819 = vmatprep.subr.bf16.mxu0 0
    %1820 = vmatpush1.bf16.msra.mxu0 0
    %1821 = vmatprep.subr.bf16.mxu0 0
    %1822 = vmatpush1.bf16.msra.mxu0 %v1805
    %1823 = vmatprep.subr.bf16.mxu0 0
    %1824 = vmatpush2.bf16.msra.mxu0 0
    %1825 = vmatprep.subr.bf16.mxu0 0
    %1826 = vmatpush2.bf16.msra.mxu0 0
    %1827 = vmatprep.subr.bf16.mxu0 0
    %1828 = vmatpush2.bf16.msra.mxu0 0
    %1829 = vmatprep.subr.bf16.mxu0 0
    %1830 = vmatpush2.bf16.msra.mxu0 0
    %1831 = vmatprep.subr.bf16.mxu0 0
    %1832 = vmatpush2.bf16.msra.mxu0 0
    %1833 = vmatprep.subr.bf16.mxu0 0
    %1834 = vmatpush2.bf16.msra.mxu0 0
    %1835 = vmatprep.subr.bf16.mxu0 0
    %1836 = vmatpush2.bf16.msra.mxu0 0
    %1837 = vmatprep.subr.bf16.mxu0 0
    %1838 = vmatpush2.bf16.msra.mxu0 0
    %1839 = vmatprep.mubr.bf16.mxu0 0
    %1840 = vmatmul.mubr.bf16.gmra.mxu0 %v1799
    %v1841 = vpop.f32.mrf.mxu0
    %v1842 = vadd.f32 0.0, %v1841
    %v1843 = vpop.f32.mrf.mxu0
    %v1844 = vpop.f32.mrf.mxu0
    %v1845 = vadd.f32 0.0, %v1844
    %v1846 = vpop.f32.mrf.mxu0
    %1847 = vmatprep.mubr.bf16.mxu0 0
    %1848 = vmatmul.mubr.bf16.gmra.mxu0 %v1802
    %v1849 = vpop.f32.mrf.mxu0
    %v1850 = vadd.f32 0.0, %v1849
    %v1851 = vpop.f32.mrf.mxu0
    %v1852 = vpop.f32.mrf.mxu0
    %v1853 = vadd.f32 0.0, %v1852
    %v1854 = vpop.f32.mrf.mxu0
    %1855 = vdwg.mxu0
    %v1857 = vsel %vm781, %v1782, 0
    %v1860 = vsel %vm781, %v1783, 0
    %v1863 = vsel %vm788, %v1781, 0
    %1865 = vmatprep.subr.bf16.mxu0 0
    %1866 = vmatpush1.bf16.msra.mxu0 0
    %1867 = vmatprep.subr.bf16.mxu0 0
    %1868 = vmatpush1.bf16.msra.mxu0 0
    %1869 = vmatprep.subr.bf16.mxu0 0
    %1870 = vmatpush1.bf16.msra.mxu0 0
    %1871 = vmatprep.subr.bf16.mxu0 0
    %1872 = vmatpush1.bf16.msra.mxu0 0
    %1873 = vmatprep.subr.bf16.mxu0 0
    %1874 = vmatpush1.bf16.msra.mxu0 0
    %1875 = vmatprep.subr.bf16.mxu0 0
    %1876 = vmatpush1.bf16.msra.mxu0 0
    %1877 = vmatprep.subr.bf16.mxu0 0
    %1878 = vmatpush1.bf16.msra.mxu0 0
    %1879 = vmatprep.subr.bf16.mxu0 0
    %1880 = vmatpush1.bf16.msra.mxu0 %v1863
    %1881 = vmatprep.subr.bf16.mxu0 0
    %1882 = vmatpush2.bf16.msra.mxu0 0
    %1883 = vmatprep.subr.bf16.mxu0 0
    %1884 = vmatpush2.bf16.msra.mxu0 0
    %1885 = vmatprep.subr.bf16.mxu0 0
    %1886 = vmatpush2.bf16.msra.mxu0 0
    %1887 = vmatprep.subr.bf16.mxu0 0
    %1888 = vmatpush2.bf16.msra.mxu0 0
    %1889 = vmatprep.subr.bf16.mxu0 0
    %1890 = vmatpush2.bf16.msra.mxu0 0
    %1891 = vmatprep.subr.bf16.mxu0 0
    %1892 = vmatpush2.bf16.msra.mxu0 0
    %1893 = vmatprep.subr.bf16.mxu0 0
    %1894 = vmatpush2.bf16.msra.mxu0 0
    %1895 = vmatprep.subr.bf16.mxu0 0
    %1896 = vmatpush2.bf16.msra.mxu0 0
    %1897 = vmatprep.mubr.bf16.mxu0 0
    %1898 = vmatmul.mubr.bf16.gmra.mxu0 %v1857
    %v1899 = vpop.f32.mrf.mxu0
    %v1900 = vadd.f32 %v1842, %v1899
    %v1901 = vpop.f32.mrf.mxu0
    %v1902 = vpop.f32.mrf.mxu0
    %v1903 = vadd.f32 %v1845, %v1902
    %v1904 = vpop.f32.mrf.mxu0
    %1905 = vmatprep.mubr.bf16.mxu0 0
    %1906 = vmatmul.mubr.bf16.gmra.mxu0 %v1860
    %v1907 = vpop.f32.mrf.mxu0
    %v1908 = vadd.f32 %v1850, %v1907
    %v1909 = vpop.f32.mrf.mxu0
    %v1910 = vpop.f32.mrf.mxu0
    %v1911 = vadd.f32 %v1853, %v1910
    %v1912 = vpop.f32.mrf.mxu0
    %1913 = vdwg.mxu0
    %v1914 = vsel %vm1448, %v1775, 0.0
    %v1915 = vsel %vm1449, %v1772, 0.0
    %v1916 = vsel %vm1450, %v1773, 0.0
    %v1917 = vsel %vm1451, %v1774, 0.0
    %v1918 = vpack.c.bf16 %v1915, %v1914
    %v1919 = vpack.c.bf16 %v1917, %v1916
    %v1921 = vsel %vm781, %v1918, 0
    %v1924 = vsel %vm781, %v1919, 0
    %v1927 = vsel %vm788, %v1777, 0
    %1929 = vmatprep.subr.bf16.mxu0 0
    %1930 = vmatpush1.bf16.msra.mxu0 0
    %1931 = vmatprep.subr.bf16.mxu0 0
    %1932 = vmatpush1.bf16.msra.mxu0 0
    %1933 = vmatprep.subr.bf16.mxu0 0
    %1934 = vmatpush1.bf16.msra.mxu0 0
    %1935 = vmatprep.subr.bf16.mxu0 0
    %1936 = vmatpush1.bf16.msra.mxu0 0
    %1937 = vmatprep.subr.bf16.mxu0 0
    %1938 = vmatpush1.bf16.msra.mxu0 0
    %1939 = vmatprep.subr.bf16.mxu0 0
    %1940 = vmatpush1.bf16.msra.mxu0 0
    %1941 = vmatprep.subr.bf16.mxu0 0
    %1942 = vmatpush1.bf16.msra.mxu0 0
    %1943 = vmatprep.subr.bf16.mxu0 0
    %1944 = vmatpush1.bf16.msra.mxu0 %v1927
    %1945 = vmatprep.subr.bf16.mxu0 0
    %1946 = vmatpush2.bf16.msra.mxu0 0
    %1947 = vmatprep.subr.bf16.mxu0 0
    %1948 = vmatpush2.bf16.msra.mxu0 0
    %1949 = vmatprep.subr.bf16.mxu0 0
    %1950 = vmatpush2.bf16.msra.mxu0 0
    %1951 = vmatprep.subr.bf16.mxu0 0
    %1952 = vmatpush2.bf16.msra.mxu0 0
    %1953 = vmatprep.subr.bf16.mxu0 0
    %1954 = vmatpush2.bf16.msra.mxu0 0
    %1955 = vmatprep.subr.bf16.mxu0 0
    %1956 = vmatpush2.bf16.msra.mxu0 0
    %1957 = vmatprep.subr.bf16.mxu0 0
    %1958 = vmatpush2.bf16.msra.mxu0 0
    %1959 = vmatprep.subr.bf16.mxu0 0
    %1960 = vmatpush2.bf16.msra.mxu0 0
    %1961 = vmatprep.mubr.bf16.mxu0 0
    %1962 = vmatmul.mubr.bf16.gmra.mxu0 %v1921
    %v1963 = vpop.f32.mrf.mxu0
    %v1964 = vadd.f32 0.0, %v1963
    %v1965 = vpop.f32.mrf.mxu0
    %v1966 = vpop.f32.mrf.mxu0
    %v1967 = vadd.f32 0.0, %v1966
    %v1968 = vpop.f32.mrf.mxu0
    %1969 = vmatprep.mubr.bf16.mxu0 0
    %1970 = vmatmul.mubr.bf16.gmra.mxu0 %v1924
    %v1971 = vpop.f32.mrf.mxu0
    %v1972 = vadd.f32 0.0, %v1971
    %v1973 = vpop.f32.mrf.mxu0
    %v1974 = vpop.f32.mrf.mxu0
    %v1975 = vadd.f32 0.0, %v1974
    %v1976 = vpop.f32.mrf.mxu0
    %1977 = vdwg.mxu0
    %v1978 = vadd.f32 %v1900, %v1964
    %v1979 = vadd.f32 %v1903, %v1967
    %v1980 = vadd.f32 %v1908, %v1972
    %v1981 = vadd.f32 %v1911, %v1975
    %v1982 = vrot.slane %v1772, 2
    %v1983 = vrot.slane %v1773, 2
    %v1984 = vrot.slane %v1774, 2
    %v1985 = vrot.slane %v1775, 2
    %v1986 = vsel %vm1528, %v1984, %v1985
    %v1987 = vsel %vm1528, %v1983, %v1984
    %v1988 = vsel %vm1528, %v1982, %v1983
    %v1989 = vsel %vm1528, %v1985, %v1982
    %v1990 = vsel %vm1537, %v1989, 0.0
    %v1991 = vsel %vm1538, %v1988, 0.0
    %v1992 = vsel %vm1539, %v1987, 0.0
    %v1993 = vsel %vm1540, %v1986, 0.0
    %v1994 = vpack.c.bf16 %v1991, %v1990
    %v1995 = vpack.c.bf16 %v1993, %v1992
    %v1997 = vsel %vm781, %v1994, 0
    %v2000 = vsel %vm781, %v1995, 0
    %v2003 = vsel %vm788, %v1778, 0
    %2005 = vmatprep.subr.bf16.mxu0 0
    %2006 = vmatpush1.bf16.msra.mxu0 0
    %2007 = vmatprep.subr.bf16.mxu0 0
    %2008 = vmatpush1.bf16.msra.mxu0 0
    %2009 = vmatprep.subr.bf16.mxu0 0
    %2010 = vmatpush1.bf16.msra.mxu0 0
    %2011 = vmatprep.subr.bf16.mxu0 0
    %2012 = vmatpush1.bf16.msra.mxu0 0
    %2013 = vmatprep.subr.bf16.mxu0 0
    %2014 = vmatpush1.bf16.msra.mxu0 0
    %2015 = vmatprep.subr.bf16.mxu0 0
    %2016 = vmatpush1.bf16.msra.mxu0 0
    %2017 = vmatprep.subr.bf16.mxu0 0
    %2018 = vmatpush1.bf16.msra.mxu0 0
    %2019 = vmatprep.subr.bf16.mxu0 0
    %2020 = vmatpush1.bf16.msra.mxu0 %v2003
    %2021 = vmatprep.subr.bf16.mxu0 0
    %2022 = vmatpush2.bf16.msra.mxu0 0
    %2023 = vmatprep.subr.bf16.mxu0 0
    %2024 = vmatpush2.bf16.msra.mxu0 0
    %2025 = vmatprep.subr.bf16.mxu0 0
    %2026 = vmatpush2.bf16.msra.mxu0 0
    %2027 = vmatprep.subr.bf16.mxu0 0
    %2028 = vmatpush2.bf16.msra.mxu0 0
    %2029 = vmatprep.subr.bf16.mxu0 0
    %2030 = vmatpush2.bf16.msra.mxu0 0
    %2031 = vmatprep.subr.bf16.mxu0 0
    %2032 = vmatpush2.bf16.msra.mxu0 0
    %2033 = vmatprep.subr.bf16.mxu0 0
    %2034 = vmatpush2.bf16.msra.mxu0 0
    %2035 = vmatprep.subr.bf16.mxu0 0
    %2036 = vmatpush2.bf16.msra.mxu0 0
    %2037 = vmatprep.mubr.bf16.mxu0 0
    %2038 = vmatmul.mubr.bf16.gmra.mxu0 %v1997
    %v2039 = vpop.f32.mrf.mxu0
    %v2040 = vadd.f32 0.0, %v2039
    %v2041 = vpop.f32.mrf.mxu0
    %v2042 = vpop.f32.mrf.mxu0
    %v2043 = vadd.f32 0.0, %v2042
    %v2044 = vpop.f32.mrf.mxu0
    %2045 = vmatprep.mubr.bf16.mxu0 0
    %2046 = vmatmul.mubr.bf16.gmra.mxu0 %v2000
    %v2047 = vpop.f32.mrf.mxu0
    %v2048 = vadd.f32 0.0, %v2047
    %v2049 = vpop.f32.mrf.mxu0
    %v2050 = vpop.f32.mrf.mxu0
    %v2051 = vadd.f32 0.0, %v2050
    %v2052 = vpop.f32.mrf.mxu0
    %2053 = vdwg.mxu0
    %v2054 = vadd.f32 %v1978, %v2040
    %v2055 = vadd.f32 %v1979, %v2043
    %v2056 = vadd.f32 %v1980, %v2048
    %v2057 = vadd.f32 %v1981, %v2051
    %v2058 = vrot.slane %v1772, 4
    %v2059 = vrot.slane %v1773, 4
    %v2060 = vrot.slane %v1774, 4
    %v2061 = vrot.slane %v1775, 4
    %v2062 = vsel %vm388, %v2060, %v2061
    %v2063 = vsel %vm388, %v2059, %v2060
    %v2064 = vsel %vm388, %v2058, %v2059
    %v2065 = vsel %vm388, %v2061, %v2058
    %v2066 = vsel %vm397, %v2065, 0.0
    %v2067 = vsel %vm398, %v2064, 0.0
    %v2068 = vsel %vm399, %v2063, 0.0
    %v2069 = vsel %vm400, %v2062, 0.0
    %v2070 = vpack.c.bf16 %v2067, %v2066
    %v2071 = vpack.c.bf16 %v2069, %v2068
    %v2073 = vsel %vm781, %v2070, 0
    %v2076 = vsel %vm781, %v2071, 0
    %v2079 = vsel %vm788, %v1779, 0
    %2081 = vmatprep.subr.bf16.mxu0 0
    %2082 = vmatpush1.bf16.msra.mxu0 0
    %2083 = vmatprep.subr.bf16.mxu0 0
    %2084 = vmatpush1.bf16.msra.mxu0 0
    %2085 = vmatprep.subr.bf16.mxu0 0
    %2086 = vmatpush1.bf16.msra.mxu0 0
    %2087 = vmatprep.subr.bf16.mxu0 0
    %2088 = vmatpush1.bf16.msra.mxu0 0
    %2089 = vmatprep.subr.bf16.mxu0 0
    %2090 = vmatpush1.bf16.msra.mxu0 0
    %2091 = vmatprep.subr.bf16.mxu0 0
    %2092 = vmatpush1.bf16.msra.mxu0 0
    %2093 = vmatprep.subr.bf16.mxu0 0
    %2094 = vmatpush1.bf16.msra.mxu0 0
    %2095 = vmatprep.subr.bf16.mxu0 0
    %2096 = vmatpush1.bf16.msra.mxu0 %v2079
    %2097 = vmatprep.subr.bf16.mxu0 0
    %2098 = vmatpush2.bf16.msra.mxu0 0
    %2099 = vmatprep.subr.bf16.mxu0 0
    %2100 = vmatpush2.bf16.msra.mxu0 0
    %2101 = vmatprep.subr.bf16.mxu0 0
    %2102 = vmatpush2.bf16.msra.mxu0 0
    %2103 = vmatprep.subr.bf16.mxu0 0
    %2104 = vmatpush2.bf16.msra.mxu0 0
    %2105 = vmatprep.subr.bf16.mxu0 0
    %2106 = vmatpush2.bf16.msra.mxu0 0
    %2107 = vmatprep.subr.bf16.mxu0 0
    %2108 = vmatpush2.bf16.msra.mxu0 0
    %2109 = vmatprep.subr.bf16.mxu0 0
    %2110 = vmatpush2.bf16.msra.mxu0 0
    %2111 = vmatprep.subr.bf16.mxu0 0
    %2112 = vmatpush2.bf16.msra.mxu0 0
    %2113 = vmatprep.mubr.bf16.mxu0 0
    %2114 = vmatmul.mubr.bf16.gmra.mxu0 %v2073
    %v2115 = vpop.f32.mrf.mxu0
    %v2116 = vadd.f32 0.0, %v2115
    %v2117 = vpop.f32.mrf.mxu0
    %v2118 = vpop.f32.mrf.mxu0
    %v2119 = vadd.f32 0.0, %v2118
    %v2120 = vpop.f32.mrf.mxu0
    %2121 = vmatprep.mubr.bf16.mxu0 0
    %2122 = vmatmul.mubr.bf16.gmra.mxu0 %v2076
    %v2123 = vpop.f32.mrf.mxu0
    %v2124 = vadd.f32 0.0, %v2123
    %v2125 = vpop.f32.mrf.mxu0
    %v2126 = vpop.f32.mrf.mxu0
    %v2127 = vadd.f32 0.0, %v2126
    %v2128 = vpop.f32.mrf.mxu0
    %2129 = vdwg.mxu0
    %v2130 = vadd.f32 %v2054, %v2116
    %v2131 = vadd.f32 %v2055, %v2119
    %v2132 = vadd.f32 %v2056, %v2124
    %v2133 = vadd.f32 %v2057, %v2127
    %v2134 = vsel %vm575, %v1791, 0.0
    %v2135 = vsel %vm576, %v1790, 0.0
    %v2136 = vsel %vm577, %v1789, 0.0
    %v2137 = vsel %vm578, %v1788, 0.0
    %v2138 = vpack.c.bf16 %v2135, %v2134
    %v2139 = vpack.c.bf16 %v2137, %v2136
    %v2141 = vsel %vm781, %v2138, 0
    %v2144 = vsel %vm781, %v2139, 0
    %v2147 = vsel %vm788, %v1780, 0
    %2149 = vmatprep.subr.bf16.mxu0 0
    %2150 = vmatpush1.bf16.msra.mxu0 0
    %2151 = vmatprep.subr.bf16.mxu0 0
    %2152 = vmatpush1.bf16.msra.mxu0 0
    %2153 = vmatprep.subr.bf16.mxu0 0
    %2154 = vmatpush1.bf16.msra.mxu0 0
    %2155 = vmatprep.subr.bf16.mxu0 0
    %2156 = vmatpush1.bf16.msra.mxu0 0
    %2157 = vmatprep.subr.bf16.mxu0 0
    %2158 = vmatpush1.bf16.msra.mxu0 0
    %2159 = vmatprep.subr.bf16.mxu0 0
    %2160 = vmatpush1.bf16.msra.mxu0 0
    %2161 = vmatprep.subr.bf16.mxu0 0
    %2162 = vmatpush1.bf16.msra.mxu0 0
    %2163 = vmatprep.subr.bf16.mxu0 0
    %2164 = vmatpush1.bf16.msra.mxu0 %v2147
    %2165 = vmatprep.subr.bf16.mxu0 0
    %2166 = vmatpush2.bf16.msra.mxu0 0
    %2167 = vmatprep.subr.bf16.mxu0 0
    %2168 = vmatpush2.bf16.msra.mxu0 0
    %2169 = vmatprep.subr.bf16.mxu0 0
    %2170 = vmatpush2.bf16.msra.mxu0 0
    %2171 = vmatprep.subr.bf16.mxu0 0
    %2172 = vmatpush2.bf16.msra.mxu0 0
    %2173 = vmatprep.subr.bf16.mxu0 0
    %2174 = vmatpush2.bf16.msra.mxu0 0
    %2175 = vmatprep.subr.bf16.mxu0 0
    %2176 = vmatpush2.bf16.msra.mxu0 0
    %2177 = vmatprep.subr.bf16.mxu0 0
    %2178 = vmatpush2.bf16.msra.mxu0 0
    %2179 = vmatprep.subr.bf16.mxu0 0
    %2180 = vmatpush2.bf16.msra.mxu0 0
    %2181 = vmatprep.mubr.bf16.mxu0 0
    %2182 = vmatmul.mubr.bf16.gmra.mxu0 %v2141
    %v2183 = vpop.f32.mrf.mxu0
    %v2184 = vadd.f32 0.0, %v2183
    %v2185 = vpop.f32.mrf.mxu0
    %v2186 = vpop.f32.mrf.mxu0
    %v2187 = vadd.f32 0.0, %v2186
    %v2188 = vpop.f32.mrf.mxu0
    %2189 = vmatprep.mubr.bf16.mxu0 0
    %2190 = vmatmul.mubr.bf16.gmra.mxu0 %v2144
    %v2191 = vpop.f32.mrf.mxu0
    %v2192 = vadd.f32 0.0, %v2191
    %v2193 = vpop.f32.mrf.mxu0
    %v2194 = vpop.f32.mrf.mxu0
    %v2195 = vadd.f32 0.0, %v2194
    %v2196 = vpop.f32.mrf.mxu0
    %2197 = vdwg.mxu0
    %v2198 = vadd.f32 %v2130, %v2184
    %v2199 = vadd.f32 %v2131, %v2187
    %v2200 = vadd.f32 %v2132, %v2192
    %v2201 = vadd.f32 %v2133, %v2195
    %v2202 = vld [vmem:[%s10] sm:$0x1]
    %v2204 = vlaneseq
    %v2205 = vshrl.u32 %v2204, 7
    %v2206 = vsub.s32 0, %v2205
    %v2207 = vrot.slane %v2202, %v2206
    %v2209 = vadd.f32 %v2198, %v2207
    %v2210 = vadd.f32 %v2199, %v2207
    %v2211 = vadd.f32 %v2200, %v2207
    %v2212 = vadd.f32 %v2201, %v2207
    %vm2213 = vcmp.gt.f32.partialorder %v2209, 0.0
    %vm2214 = vcmp.gt.f32.partialorder %v2210, 0.0
    %vm2215 = vcmp.gt.f32.partialorder %v2211, 0.0
    %vm2216 = vcmp.gt.f32.partialorder %v2212, 0.0
    %v2217 = vmul.f32 %v2209, 0.01
    %v2218 = vmul.f32 %v2210, 0.01
    %v2219 = vmul.f32 %v2211, 0.01
    %v2220 = vmul.f32 %v2212, 0.01
    %v2221 = vsel %vm2213, %v2209, %v2217
    %v2222 = vsel %vm2214, %v2210, %v2218
    %v2223 = vsel %vm2215, %v2211, %v2219
    %v2224 = vsel %vm2216, %v2212, %v2220
    %v2225 = vadd.f32 %v2221, %v1286
    %v2226 = vadd.f32 %v2222, %v1287
    %v2227 = vadd.f32 %v2223, %v1288
    %v2228 = vadd.f32 %v2224, %v1289
    %2229 = vxpose.xlu0.b32.start [1/16] %v2225, 128
    %2230 = vxpose.xlu0.b32.cont [2/16] %v2226, 128
    %2231 = vxpose.xlu0.b32.cont [3/16] 0.0, 128
    %2232 = vxpose.xlu0.b32.cont [4/16] 0.0, 128
    %2233 = vxpose.xlu0.b32.cont [5/16] 0.0, 128
    %2234 = vxpose.xlu0.b32.cont [6/16] 0.0, 128
    %2235 = vxpose.xlu0.b32.cont [7/16] 0.0, 128
    %2236 = vxpose.xlu0.b32.cont [8/16] 0.0, 128
    %2237 = vxpose.xlu0.b32.cont [9/16] 0.0, 128
    %2238 = vxpose.xlu0.b32.cont [10/16] 0.0, 128
    %2239 = vxpose.xlu0.b32.cont [11/16] 0.0, 128
    %2240 = vxpose.xlu0.b32.cont [12/16] 0.0, 128
    %2241 = vxpose.xlu0.b32.cont [13/16] 0.0, 128
    %2242 = vxpose.xlu0.b32.cont [14/16] 0.0, 128
    %2243 = vxpose.xlu0.b32.cont [15/16] 0.0, 128
    %2244 = vxpose.xlu0.b32.end [16/16] 0.0, 128
    %v2245 = vpop.trf.xlu0
    %v2246 = vpop.trf.xlu0
    %v2247 = vpop.trf.xlu0
    %v2248 = vpop.trf.xlu0
    %v2249 = vpop.trf.xlu0
    %v2250 = vpop.trf.xlu0
    %v2251 = vpop.trf.xlu0
    %v2252 = vpop.trf.xlu0
    %v2253 = vpop.trf.xlu0
    %v2254 = vpop.trf.xlu0
    %v2255 = vpop.trf.xlu0
    %v2256 = vpop.trf.xlu0
    %v2257 = vpop.trf.xlu0
    %v2258 = vpop.trf.xlu0
    %v2259 = vpop.trf.xlu0
    %v2260 = vpop.trf.xlu0
    %2261 = vxpose.xlu0.b32.start [1/16] %v2227, 128
    %2262 = vxpose.xlu0.b32.cont [2/16] %v2228, 128
    %2263 = vxpose.xlu0.b32.cont [3/16] 0.0, 128
    %2264 = vxpose.xlu0.b32.cont [4/16] 0.0, 128
    %2265 = vxpose.xlu0.b32.cont [5/16] 0.0, 128
    %2266 = vxpose.xlu0.b32.cont [6/16] 0.0, 128
    %2267 = vxpose.xlu0.b32.cont [7/16] 0.0, 128
    %2268 = vxpose.xlu0.b32.cont [8/16] 0.0, 128
    %2269 = vxpose.xlu0.b32.cont [9/16] 0.0, 128
    %2270 = vxpose.xlu0.b32.cont [10/16] 0.0, 128
    %2271 = vxpose.xlu0.b32.cont [11/16] 0.0, 128
    %2272 = vxpose.xlu0.b32.cont [12/16] 0.0, 128
    %2273 = vxpose.xlu0.b32.cont [13/16] 0.0, 128
    %2274 = vxpose.xlu0.b32.cont [14/16] 0.0, 128
    %2275 = vxpose.xlu0.b32.cont [15/16] 0.0, 128
    %2276 = vxpose.xlu0.b32.end [16/16] 0.0, 128
    %v2277 = vpop.trf.xlu0
    %v2278 = vpop.trf.xlu0
    %v2279 = vpop.trf.xlu0
    %v2280 = vpop.trf.xlu0
    %v2281 = vpop.trf.xlu0
    %v2282 = vpop.trf.xlu0
    %v2283 = vpop.trf.xlu0
    %v2284 = vpop.trf.xlu0
    %v2285 = vpop.trf.xlu0
    %v2286 = vpop.trf.xlu0
    %v2287 = vpop.trf.xlu0
    %v2288 = vpop.trf.xlu0
    %v2289 = vpop.trf.xlu0
    %v2290 = vpop.trf.xlu0
    %v2291 = vpop.trf.xlu0
    %v2292 = vpop.trf.xlu0
    %vm2293 = vcmask 130048
    %2294 = vst.msk [vmem:[#allocation11] sm:$0xff] %vm2293, %v2245
    %2295 = vst.msk [vmem:[#allocation11 + $0x8] sm:$0xff] %vm2293, %v2277
    // Predicated region
    $region66: #{tpu_custom_call.1} parent=1 // pred_check
      _
    $region67: #{tpu_custom_call.1} parent=1 // pred_check_branch
      %2297 = sbr.rel (0) target = $region69
    $region68: #{tpu_custom_call.1} parent=1 // pred_region
      %s2299 = ssub.s32 256, 256
      %2300 = vsyncadd [#allocation4], %s2299
      %s2301 = sshll.u32 [#allocation11], 4
      %s2302 = int_to_ptr.vmem [resolvable:$true] %s2301
      %2307 = dma.vmem_to_hbm [thread:$0]  %s2302, 256, %s11, [#allocation4], 128, 128, 8
    $region69: #{tpu_custom_call.1} parent=1 // pred_fallthru
      _
    // Predicated region
    $region70: #{tpu_custom_call.1} parent=1 // pred_check
      _
    $region71: #{tpu_custom_call.1} parent=1 // pred_check_branch
      %2309 = sbr.rel (0) target = $region73
    $region72: #{tpu_custom_call.1} parent=1 // pred_region
      %2310 = dma.done [#allocation4], 256
    $region73: #{tpu_custom_call.1} parent=1 // pred_fallthru
      _
    %2311 = vsyncpa [#allocation3], 1
    %2312 = vsyncpa [#allocation6], 1
    %2313 = vsyncpa [#allocation9], 1
    %2314 = vsyncpa [#allocation4], 1

</llo_original>
